<compile_context>
chip_gen: v6e
topology: v6e:2x2x1
jax: 0.10.0
libtpu: 0.0.40
codegen_flags: <defaults>
</compile_context>

<pallas_src>
import functools
import math

import jax
import jax.numpy as jnp
from jax import lax
from jax.experimental import pallas as pl
from jax.experimental.pallas import tpu as pltpu

_VMEM = pl.BlockSpec(memory_space=pltpu.MemorySpace.VMEM)
_SMEM = pl.BlockSpec(memory_space=pltpu.MemorySpace.SMEM)

_LANE = 128        # lane width / channel padding unit
_ROW_TILE = 512    # row tile for the fused point-MLP grid (was 128)
_M_TILE = 256      # cluster-row tile for the kNN/max-pool grid (128 on v5e is fine too)


def _round_up(x, m):
    return ((x + m - 1) // m) * m


# ---------------------------------------------------------------------------
# Kernel 1: fused DeformConv offset net + feature MLP + TransitionDown.bn
#   One pallas_call, grid over point rows ("parallel").  Weights resident
#   (whole-array VMEM operands, single-buffered).  BNs already folded into the
#   Linear weights on the host.  Emits:
#     slab (8, Npad) f32 :  rows 0-2 = -2*dpos, row 3 = |dpos|^2 (+1e30 pad
#                           mask), rows 4-6 = dpos, row 7 = 0
#     feat (Npad, Cpad) bf16 : bn(relu(Linear(x)))
# ---------------------------------------------------------------------------
def _fused_mlp_kernel(posT_ref, x_ref,
                      w1_ref, b1_ref, w2_ref, b2_ref, w3_ref, b3_ref,
                      wf_ref, bf_ref, sf2_ref, tf2_ref,
                      slab_ref, feat_ref, *, n_valid):
    tn = posT_ref.shape[1]
    posT = posT_ref[...]                                           # (8, TN), rows 3-7 = 0

    # Offset net, computed transposed (points on lanes).
    h = jnp.dot(w1_ref[...], posT, preferred_element_type=jnp.float32) + b1_ref[...]
    h = jnp.maximum(h, 0.0)                                        # (32, TN)
    h = jnp.dot(w2_ref[...], h, preferred_element_type=jnp.float32) + b2_ref[...]
    h = jnp.maximum(h, 0.0)                                        # (64, TN)
    off = jnp.dot(w3_ref[...], h, preferred_element_type=jnp.float32) + b3_ref[...]
    dposT = posT + jnp.tanh(off) * 0.1                             # (8, TN), rows 3-7 = 0

    xr = dposT[0:1, :]
    yr = dposT[1:2, :]
    zr = dposT[2:3, :]
    sumsq = xr * xr + yr * yr + zr * zr                            # (1, TN)
    lane = lax.broadcasted_iota(jnp.int32, (1, tn), 1) + pl.program_id(0) * tn
    sumsq = jnp.where(lane < n_valid, sumsq, jnp.float32(1e30))    # bake pad mask

    slab_ref[0:3, :] = -2.0 * dposT[0:3, :]
    slab_ref[3:4, :] = sumsq
    slab_ref[4:7, :] = dposT[0:3, :]
    slab_ref[7:8, :] = jnp.zeros((1, tn), jnp.float32)

    # Feature MLP (BN folded into wf/bf) + TransitionDown.bn affine, bf16 out.
    f = jnp.dot(x_ref[...], wf_ref[...], preferred_element_type=jnp.float32) + bf_ref[...]
    f = jnp.maximum(f, 0.0)
    feat_ref[...] = (f * sf2_ref[...] + tf2_ref[...]).astype(feat_ref.dtype)


def fused_point_mlps(posT_pad, x_pad, weights, *, n_valid):
    npad = posT_pad.shape[1]
    cin = x_pad.shape[1]
    cpad = weights[-1].shape[1]
    tn = _ROW_TILE
    kernel = functools.partial(_fused_mlp_kernel, n_valid=n_valid)
    return pl.pallas_call(
        kernel,
        grid=(npad // tn,),
        out_shape=(jax.ShapeDtypeStruct((8, npad), jnp.float32),
                   jax.ShapeDtypeStruct((npad, cpad), jnp.bfloat16)),
        in_specs=[pl.BlockSpec((8, tn), lambda i: (0, i)),
                  pl.BlockSpec((tn, cin), lambda i: (i, 0))] + [_VMEM] * len(weights),
        out_specs=[pl.BlockSpec((8, tn), lambda i: (0, i)),
                   pl.BlockSpec((tn, cpad), lambda i: (i, 0))],
        compiler_params=pltpu.CompilerParams(
            dimension_semantics=("parallel",)),
    )(posT_pad, x_pad, *weights)


# ---------------------------------------------------------------------------
# Kernel 2: farthest point sampling — lane-dense (r, 128) distance layout,
#   |p|^2 precomputed once (pad points -> -inf, no per-iteration mask),
#   selected-point coordinates come from SMEM scalar loads.
# TODO(synk): torch_geometric.fps uses a random start point by default; we use
#             a deterministic start index 0 (random_start=False semantics).
# TODO(synk): fused value/index arg-max reduction and a v7x dual-TensorCore
#             split of the serial distance update are further possible wins.
# ---------------------------------------------------------------------------
def _fps_kernel(xs_ref, ys_ref, zs_ref, p_ref, idx_ref, dist_ref, pp_ref,
                *, num_samples, n):
    r = dist_ref.shape[0]
    row = lax.broadcasted_iota(jnp.int32, (r, _LANE), 0)
    col = lax.broadcasted_iota(jnp.int32, (r, _LANE), 1)
    flat = row * _LANE + col
    npad = r * _LANE

    px = p_ref[0]
    py = p_ref[1]
    pz = p_ref[2]
    pp = px * px + py * py + pz * pz
    pp_ref[...] = jnp.where(flat < n, pp, -jnp.inf)        # pads never win argmax

    idx_ref[0] = jnp.int32(0)
    x0, y0, z0 = xs_ref[0], ys_ref[0], zs_ref[0]
    dist_ref[...] = (pp_ref[...] + px * (-2.0 * x0) + py * (-2.0 * y0)
                     + pz * (-2.0 * z0) + (x0 * x0 + y0 * y0 + z0 * z0))

    def body(i, carry):
        d = dist_ref[...]
        dmax = jnp.max(d)
        idx = jnp.min(jnp.where(d >= dmax, flat, npad))    # first arg-max
        idx_ref[i] = idx
        xi, yi, zi = xs_ref[idx], ys_ref[idx], zs_ref[idx]  # scalar-path loads
        ci = xi * xi + yi * yi + zi * zi                    # scalar unit
        nd = (pp_ref[...] + p_ref[0] * (-2.0 * xi) + p_ref[1] * (-2.0 * yi)
              + p_ref[2] * (-2.0 * zi) + ci)
        dist_ref[...] = jnp.minimum(d, nd)
        return carry

    lax.fori_loop(1, num_samples, body, 0)


def fps(xs, ys, zs, pxyz, num_samples, n):
    r = pxyz.shape[1]
    kernel = functools.partial(_fps_kernel, num_samples=num_samples, n=n)
    return pl.pallas_call(
        kernel,
        out_shape=jax.ShapeDtypeStruct((num_samples,), jnp.int32),
        in_specs=[_SMEM, _SMEM, _SMEM, _VMEM],
        out_specs=_SMEM,
        scratch_shapes=[pltpu.VMEM((r, _LANE), jnp.float32),   # running distances
                        pltpu.VMEM((r, _LANE), jnp.float32)],  # |p|^2 (+pad -inf)
    )(xs, ys, zs, pxyz)


# ---------------------------------------------------------------------------
# Kernel 3: fused kNN + gather + scatter-max, gridded over cluster-row tiles.
#   d'[m,n] = |b_n|^2 - 2 a_m.b_n via one MXU matmul against the resident slab
#   (pad mask already baked into the |b|^2 row); the k nearest neighbours are
#   gathered with a bf16 one-hot @ bf16 feat matmul on the MXU and max-pooled.
# TODO(synk): for very large N (8-16K+) chunk the Npad axis (running min/argmin
#             carry) to cut peak VMEM and per-k writeback traffic; and fold the
#             sub_pos gather in via PrefetchScalarGridSpec.
# ---------------------------------------------------------------------------
def _knn_maxpool_kernel(a_ref, slab_ref, feat_ref, out_ref, *, k):
    tm = a_ref.shape[0]
    npad = slab_ref.shape[1]
    cpad = feat_ref.shape[1]

    # (TM, 8) @ (8, Npad) -> reduced pairwise "distance" (same per-row argmin
    # as the exact ||a-b||^2; padded columns carry +1e30 from the slab).
    d = jnp.dot(a_ref[...], slab_ref[...], preferred_element_type=jnp.float32)
    col = lax.broadcasted_iota(jnp.int32, (tm, npad), 1)
    feat = feat_ref[...]                                           # (Npad, Cpad) bf16

    def body(_, carry):
        d, out = carry
        dmin = jnp.min(d, axis=1, keepdims=True)                   # (TM, 1)
        first = jnp.min(jnp.where(d <= dmin, col, npad), axis=1, keepdims=True)
        sel = col == first                                         # (TM, Npad) one-hot
        onehot = sel.astype(jnp.bfloat16)                          # 0/1 exact in bf16
        cand = jnp.dot(onehot, feat,
                       preferred_element_type=jnp.float32)         # MXU row gather
        out = jnp.maximum(out, cand)
        d = jnp.where(sel, jnp.inf, d)
        return d, out

    out0 = jnp.full((tm, cpad), -jnp.inf, jnp.float32)
    _, out = lax.fori_loop(0, k, body, (d, out0))
    out_ref[...] = out


def knn_maxpool(a_aug, slab, feat_pad, *, k):
    mpad = a_aug.shape[0]
    cpad = feat_pad.shape[1]
    tm = _M_TILE
    kernel = functools.partial(_knn_maxpool_kernel, k=k)
    return pl.pallas_call(
        kernel,
        grid=(mpad // tm,),
        out_shape=jax.ShapeDtypeStruct((mpad, cpad), jnp.float32),
        in_specs=[pl.BlockSpec((tm, 8), lambda i: (i, 0)),
                  _VMEM,      # slab: whole-array resident, single-buffered
                  _VMEM],     # feat: whole-array resident, single-buffered
        out_specs=pl.BlockSpec((tm, cpad), lambda i: (i, 0)),
        compiler_params=pltpu.CompilerParams(
            dimension_semantics=("parallel",),
            vmem_limit_bytes=48 * 1024 * 1024),
    )(a_aug, slab, feat_pad)


# ---------------------------------------------------------------------------
# Parameter init (deterministic, PyTorch-default-style) + BN folding
# ---------------------------------------------------------------------------
def _linear(key, fan_in, fan_out):
    kw, kb = jax.random.split(key)
    bound = 1.0 / math.sqrt(fan_in)
    w = jax.random.uniform(kw, (fan_in, fan_out), jnp.float32, -bound, bound)
    b = jax.random.uniform(kb, (1, fan_out), jnp.float32, -bound, bound)
    return w, b


def _bn_affine(key, dim, eps=1e-5):
    kg, kb = jax.random.split(key)
    gamma = jax.random.uniform(kg, (1, dim), jnp.float32, 0.5, 1.5)
    beta = 0.1 * jax.random.normal(kb, (1, dim), jnp.float32)
    # eval-mode BatchNorm1d with running_mean=0, running_var=1 folded to affine
    scale = gamma / jnp.sqrt(1.0 + eps)
    shift = beta
    return scale, shift


def init_params(key, cin, cout):
    ks = jax.random.split(key, 8)
    w1, b1 = _linear(ks[0], 3, 32)
    s1, t1 = _bn_affine(ks[1], 32)
    w2, b2 = _linear(ks[2], 32, 64)
    s2, t2 = _bn_affine(ks[3], 64)
    w3, b3 = _linear(ks[4], 64, 3)
    deform = dict(w1=w1, b1=b1, s1=s1, t1=t1, w2=w2, b2=b2, s2=s2, t2=t2,
                  w3=w3, b3=b3)

    wm, bm = _linear(ks[5], cin, cout)
    sm1, tm1 = _bn_affine(ks[6], cout)   # MLP([cin, cout], plain_last=False) BN
    sm2, tm2 = _bn_affine(ks[7], cout)   # TransitionDown.bn
    mlp = dict(w=wm, b=bm, s1=sm1, t1=tm1, s2=sm2, t2=tm2)
    return dict(deform=deform, mlp=mlp)


# ---------------------------------------------------------------------------
# TransitionDown.forward (batch=None path)
# ---------------------------------------------------------------------------
def transition_down(x, pos, batch, params, *, ratio=0.25, k=16):
    # TODO(synk): only the batch=None (single point cloud) path is implemented;
    #             multi-cloud batching would need per-segment fps/knn.
    assert batch is None
    n, _ = x.shape
    cout = params["mlp"]["w"].shape[1]
    assert k <= n, "k > num_points not supported (knn would return fewer neighbors)"

    tn = _ROW_TILE
    npad = _round_up(n, max(tn, _LANE))     # lane-dense / row-tiled point count
    cpad = _round_up(cout, _LANE)           # lane-dense feature channels
    r = npad // _LANE

    # ---- host-side param prep: fold eval-mode BN into the preceding Linear,
    #      transpose the offset net (points-on-lanes), pad feature MLP to Cpad.
    dp = params["deform"]
    mp = params["mlp"]
    w1f = dp["w1"] * dp["s1"]
    b1f = dp["b1"] * dp["s1"] + dp["t1"]
    w2f = dp["w2"] * dp["s2"]
    b2f = dp["b2"] * dp["s2"] + dp["t2"]
    w1t = jnp.pad(w1f, ((0, 8 - w1f.shape[0]), (0, 0))).T               # (32, 8)
    b1c = b1f.T                                                         # (32, 1)
    w2t = w2f.T                                                         # (64, 32)
    b2c = b2f.T                                                         # (64, 1)
    w3t = jnp.pad(dp["w3"], ((0, 0), (0, 8 - dp["w3"].shape[1]))).T     # (8, 64)
    b3c = jnp.pad(dp["b3"], ((0, 0), (0, 8 - dp["b3"].shape[1]))).T     # (8, 1)

    def _padc(a):
        return jnp.pad(a, ((0, 0), (0, cpad - a.shape[1])))

    wf = _padc(mp["w"] * mp["s1"])
    bf = _padc(mp["b"] * mp["s1"] + mp["t1"])
    sf2 = _padc(mp["s2"])
    tf2 = _padc(mp["t2"])

    posT = jnp.pad(pos.astype(jnp.float32), ((0, npad - n), (0, 0))).T  # (3, Npad)
    posT = jnp.pad(posT, ((0, 5), (0, 0)))                              # (8, Npad)
    x_pad = jnp.pad(x.astype(jnp.float32), ((0, npad - n), (0, 0)))

    weights = (w1t, b1c, w2t, b2c, w3t, b3c, wf, bf, sf2, tf2)
    slab, feat_pad = fused_point_mlps(posT, x_pad, weights, n_valid=n)

    # Farthest point sampling straight off the slab rows (no XLA transposes).
    m = int(math.ceil(ratio * n))
    xs, ys, zs = slab[4], slab[5], slab[6]
    pxyz = slab[4:7].reshape(3, r, _LANE)
    id_clusters = fps(xs, ys, zs, pxyz, m, n)                           # (M,) int32

    # TODO(synk): this tiny (M,3) gather + a_aug build could be folded into the
    #             kNN kernel via PrefetchScalarGridSpec; kept as XLA glue.
    sub_pos = slab[4:7][:, id_clusters].T                               # (M, 3)

    mpad = _round_up(m, _M_TILE)
    a_aug = jnp.concatenate(
        [sub_pos, jnp.ones((m, 1), jnp.float32), jnp.zeros((m, 4), jnp.float32)],
        axis=1)                                                         # (M, 8)
    a_aug = jnp.pad(a_aug, ((0, mpad - m), (0, 0)))                     # (Mpad, 8)

    out_pad = knn_maxpool(a_aug, slab, feat_pad, k=k)
    out = out_pad[:m, :cout]
    sub_batch = None
    return out, sub_pos, sub_batch


if __name__ == "__main__":
    N, CIN, COUT, RATIO, K = 64, 8, 16, 0.25, 16

    key = jax.random.PRNGKey(0)
    k_pos, k_x, k_par = jax.random.split(key, 3)
    pos = jax.random.normal(k_pos, (N, 3), jnp.float32)
    x = jax.random.normal(k_x, (N, CIN), jnp.float32)
    params = init_params(k_par, CIN, COUT)

    out, sub_pos, sub_batch = transition_down(x, pos, None, params,
                                              ratio=RATIO, k=K)
    jax.block_until_ready((out, sub_pos))

    m = int(math.ceil(RATIO * N))
    assert out.shape == (m, COUT) and sub_pos.shape == (m, 3)
    assert bool(jnp.all(jnp.isfinite(out))) and bool(jnp.all(jnp.isfinite(sub_pos)))
    assert sub_batch is None
    print("KERNEL_OK")
</pallas_src>

<mosaic_0001>
module attributes {stable_mosaic.version = 11 : i64} {
  func.func @_fused_mlp_kernel(%arg0: i32, %arg1: memref<8x512xf32, #tpu.memory_space<vmem>>, %arg2: memref<512x8xf32, #tpu.memory_space<vmem>>, %arg3: memref<32x8xf32, #tpu.memory_space<vmem>>, %arg4: memref<32x1xf32, #tpu.memory_space<vmem>>, %arg5: memref<64x32xf32, #tpu.memory_space<vmem>>, %arg6: memref<64x1xf32, #tpu.memory_space<vmem>>, %arg7: memref<8x64xf32, #tpu.memory_space<vmem>>, %arg8: memref<8x1xf32, #tpu.memory_space<vmem>>, %arg9: memref<8x128xf32, #tpu.memory_space<vmem>>, %arg10: memref<1x128xf32, #tpu.memory_space<vmem>>, %arg11: memref<1x128xf32, #tpu.memory_space<vmem>>, %arg12: memref<1x128xf32, #tpu.memory_space<vmem>>, %arg13: memref<8x512xf32, #tpu.memory_space<vmem>>, %arg14: memref<512x128xbf16, #tpu.memory_space<vmem>>) attributes {dimension_semantics = [#tpu.dimension_semantics<parallel>], iteration_bounds = array<i64: 1>, scalar_prefetch = 0 : i64, scratch_operands = 0 : i64, tpu.core_type = #tpu.core_type<tc>, window_params = [{transform_indices = @transform_0, window_bounds = array<i64: 8, 512>}, {transform_indices = @transform_1, window_bounds = array<i64: 512, 8>}, {pipeline_mode = #tpu.pipeline_mode<synchronous>, transform_indices = @transform_2, window_bounds = array<i64: 32, 8>}, {pipeline_mode = #tpu.pipeline_mode<synchronous>, transform_indices = @transform_3, window_bounds = array<i64: 32, 1>}, {pipeline_mode = #tpu.pipeline_mode<synchronous>, transform_indices = @transform_4, window_bounds = array<i64: 64, 32>}, {pipeline_mode = #tpu.pipeline_mode<synchronous>, transform_indices = @transform_5, window_bounds = array<i64: 64, 1>}, {pipeline_mode = #tpu.pipeline_mode<synchronous>, transform_indices = @transform_6, window_bounds = array<i64: 8, 64>}, {pipeline_mode = #tpu.pipeline_mode<synchronous>, transform_indices = @transform_7, window_bounds = array<i64: 8, 1>}, {pipeline_mode = #tpu.pipeline_mode<synchronous>, transform_indices = @transform_8, window_bounds = array<i64: 8, 128>}, {pipeline_mode = #tpu.pipeline_mode<synchronous>, transform_indices = @transform_9, window_bounds = array<i64: 1, 128>}, {pipeline_mode = #tpu.pipeline_mode<synchronous>, transform_indices = @transform_10, window_bounds = array<i64: 1, 128>}, {pipeline_mode = #tpu.pipeline_mode<synchronous>, transform_indices = @transform_11, window_bounds = array<i64: 1, 128>}, {transform_indices = @transform_12, window_bounds = array<i64: 8, 512>}, {transform_indices = @transform_13, window_bounds = array<i64: 512, 128>}]} {
    %c0 = arith.constant 0 : index
    %c0_0 = arith.constant 0 : index
    %0 = vector.load %arg1[%c0, %c0_0] : memref<8x512xf32, #tpu.memory_space<vmem>>, vector<8x512xf32>
    %c0_1 = arith.constant 0 : index
    %c0_2 = arith.constant 0 : index
    %1 = vector.load %arg3[%c0_1, %c0_2] : memref<32x8xf32, #tpu.memory_space<vmem>>, vector<32x8xf32>
    %cst = arith.constant dense<0.000000e+00> : vector<32x512xf32>
    %2 = tpu.matmul %1, %0, %cst {dimension_numbers = #tpu.dot_dimension_numbers<[1], [0], [0], [1], [0, 0, 1, 1], [], []>} : vector<32x8xf32>, vector<8x512xf32>, vector<32x512xf32> -> vector<32x512xf32>
    %c0_3 = arith.constant 0 : index
    %c0_4 = arith.constant 0 : index
    %3 = vector.load %arg4[%c0_3, %c0_4] : memref<32x1xf32, #tpu.memory_space<vmem>>, vector<32x1xf32>
    %4 = vector.broadcast %3 : vector<32x1xf32> to vector<32x512xf32>
    %5 = arith.addf %2, %4 : vector<32x512xf32>
    %cst_5 = arith.constant 0.000000e+00 : f32
    %6 = vector.broadcast %cst_5 : f32 to vector<32x512xf32>
    %7 = arith.maximumf %5, %6 : vector<32x512xf32>
    %c0_6 = arith.constant 0 : index
    %c0_7 = arith.constant 0 : index
    %8 = vector.load %arg5[%c0_6, %c0_7] : memref<64x32xf32, #tpu.memory_space<vmem>>, vector<64x32xf32>
    %cst_8 = arith.constant dense<0.000000e+00> : vector<64x512xf32>
    %9 = tpu.matmul %8, %7, %cst_8 {dimension_numbers = #tpu.dot_dimension_numbers<[1], [0], [0], [1], [0, 0, 1, 1], [], []>} : vector<64x32xf32>, vector<32x512xf32>, vector<64x512xf32> -> vector<64x512xf32>
    %c0_9 = arith.constant 0 : index
    %c0_10 = arith.constant 0 : index
    %10 = vector.load %arg6[%c0_9, %c0_10] : memref<64x1xf32, #tpu.memory_space<vmem>>, vector<64x1xf32>
    %11 = vector.broadcast %10 : vector<64x1xf32> to vector<64x512xf32>
    %12 = arith.addf %9, %11 : vector<64x512xf32>
    %cst_11 = arith.constant 0.000000e+00 : f32
    %13 = vector.broadcast %cst_11 : f32 to vector<64x512xf32>
    %14 = arith.maximumf %12, %13 : vector<64x512xf32>
    %c0_12 = arith.constant 0 : index
    %c0_13 = arith.constant 0 : index
    %15 = vector.load %arg7[%c0_12, %c0_13] : memref<8x64xf32, #tpu.memory_space<vmem>>, vector<8x64xf32>
    %cst_14 = arith.constant dense<0.000000e+00> : vector<8x512xf32>
    %16 = tpu.matmul %15, %14, %cst_14 {dimension_numbers = #tpu.dot_dimension_numbers<[1], [0], [0], [1], [0, 0, 1, 1], [], []>} : vector<8x64xf32>, vector<64x512xf32>, vector<8x512xf32> -> vector<8x512xf32>
    %c0_15 = arith.constant 0 : index
    %c0_16 = arith.constant 0 : index
    %17 = vector.load %arg8[%c0_15, %c0_16] : memref<8x1xf32, #tpu.memory_space<vmem>>, vector<8x1xf32>
    %18 = vector.broadcast %17 : vector<8x1xf32> to vector<8x512xf32>
    %19 = arith.addf %16, %18 : vector<8x512xf32>
    %20 = math.tanh %19 : vector<8x512xf32>
    %cst_17 = arith.constant 1.000000e-01 : f32
    %21 = vector.broadcast %cst_17 : f32 to vector<8x512xf32>
    %22 = arith.mulf %20, %21 : vector<8x512xf32>
    %23 = arith.addf %0, %22 : vector<8x512xf32>
    %24 = vector.extract_strided_slice %23 {offsets = [0, 0], sizes = [1, 512], strides = [1, 1]} : vector<8x512xf32> to vector<1x512xf32>
    %25 = vector.extract_strided_slice %23 {offsets = [1, 0], sizes = [1, 512], strides = [1, 1]} : vector<8x512xf32> to vector<1x512xf32>
    %26 = vector.extract_strided_slice %23 {offsets = [2, 0], sizes = [1, 512], strides = [1, 1]} : vector<8x512xf32> to vector<1x512xf32>
    %27 = arith.mulf %24, %24 : vector<1x512xf32>
    %28 = arith.mulf %25, %25 : vector<1x512xf32>
    %29 = arith.addf %27, %28 : vector<1x512xf32>
    %30 = arith.mulf %26, %26 : vector<1x512xf32>
    %31 = arith.addf %29, %30 : vector<1x512xf32>
    %32 = tpu.iota {dimensions = array<i32: 1>} : vector<1x512xi32>
    %c512_i32 = arith.constant 512 : i32
    %33 = arith.muli %arg0, %c512_i32 : i32
    %34 = vector.broadcast %33 : i32 to vector<1x512xi32>
    %35 = arith.addi %32, %34 : vector<1x512xi32>
    %c64_i32 = arith.constant 64 : i32
    %36 = vector.broadcast %c64_i32 : i32 to vector<1x512xi32>
    %37 = arith.cmpi slt, %35, %36 : vector<1x512xi32>
    %cst_18 = arith.constant 1.000000e+30 : f32
    %38 = vector.broadcast %cst_18 : f32 to vector<1x512xf32>
    %39 = arith.select %37, %31, %38 : vector<1x512xi1>, vector<1x512xf32>
    %40 = vector.extract_strided_slice %23 {offsets = [0, 0], sizes = [3, 512], strides = [1, 1]} : vector<8x512xf32> to vector<3x512xf32>
    %cst_19 = arith.constant -2.000000e+00 : f32
    %41 = vector.broadcast %cst_19 : f32 to vector<3x512xf32>
    %42 = arith.mulf %41, %40 : vector<3x512xf32>
    %c0_20 = arith.constant 0 : index
    %c0_21 = arith.constant 0 : index
    %43 = vector.load %arg13[%c0_20, %c0_21] : memref<8x512xf32, #tpu.memory_space<vmem>>, vector<3x512xf32>
    tpu.vector_store %arg13[%c0_20, %c0_21], %42 {strides = array<i32>} : memref<8x512xf32, #tpu.memory_space<vmem>>, vector<3x512xf32>,
    %c3 = arith.constant 3 : index
    %c0_22 = arith.constant 0 : index
    %44 = vector.load %arg13[%c3, %c0_22] : memref<8x512xf32, #tpu.memory_space<vmem>>, vector<1x512xf32>
    tpu.vector_store %arg13[%c3, %c0_22], %39 {strides = array<i32>} : memref<8x512xf32, #tpu.memory_space<vmem>>, vector<1x512xf32>,
    %45 = vector.extract_strided_slice %23 {offsets = [0, 0], sizes = [3, 512], strides = [1, 1]} : vector<8x512xf32> to vector<3x512xf32>
    %c4 = arith.constant 4 : index
    %c0_23 = arith.constant 0 : index
    %46 = vector.load %arg13[%c4, %c0_23] : memref<8x512xf32, #tpu.memory_space<vmem>>, vector<3x512xf32>
    tpu.vector_store %arg13[%c4, %c0_23], %45 {strides = array<i32>} : memref<8x512xf32, #tpu.memory_space<vmem>>, vector<3x512xf32>,
    %cst_24 = arith.constant 0.000000e+00 : f32
    %47 = vector.broadcast %cst_24 : f32 to vector<1x512xf32>
    %c7 = arith.constant 7 : index
    %c0_25 = arith.constant 0 : index
    %48 = vector.load %arg13[%c7, %c0_25] : memref<8x512xf32, #tpu.memory_space<vmem>>, vector<1x512xf32>
    tpu.vector_store %arg13[%c7, %c0_25], %47 {strides = array<i32>} : memref<8x512xf32, #tpu.memory_space<vmem>>, vector<1x512xf32>,
    %c0_26 = arith.constant 0 : index
    %c0_27 = arith.constant 0 : index
    %49 = vector.load %arg2[%c0_26, %c0_27] : memref<512x8xf32, #tpu.memory_space<vmem>>, vector<512x8xf32>
    %c0_28 = arith.constant 0 : index
    %c0_29 = arith.constant 0 : index
    %50 = vector.load %arg9[%c0_28, %c0_29] : memref<8x128xf32, #tpu.memory_space<vmem>>, vector<8x128xf32>
    %cst_30 = arith.constant dense<0.000000e+00> : vector<512x128xf32>
    %51 = tpu.matmul %49, %50, %cst_30 {dimension_numbers = #tpu.dot_dimension_numbers<[1], [0], [0], [1], [0, 0, 1, 1], [], []>} : vector<512x8xf32>, vector<8x128xf32>, vector<512x128xf32> -> vector<512x128xf32>
    %c0_31 = arith.constant 0 : index
    %c0_32 = arith.constant 0 : index
    %52 = vector.load %arg10[%c0_31, %c0_32] : memref<1x128xf32, #tpu.memory_space<vmem>>, vector<1x128xf32>
    %53 = vector.broadcast %52 : vector<1x128xf32> to vector<512x128xf32>
    %54 = arith.addf %51, %53 : vector<512x128xf32>
    %cst_33 = arith.constant 0.000000e+00 : f32
    %55 = vector.broadcast %cst_33 : f32 to vector<512x128xf32>
    %56 = arith.maximumf %54, %55 : vector<512x128xf32>
    %c0_34 = arith.constant 0 : index
    %c0_35 = arith.constant 0 : index
    %57 = vector.load %arg11[%c0_34, %c0_35] : memref<1x128xf32, #tpu.memory_space<vmem>>, vector<1x128xf32>
    %58 = vector.broadcast %57 : vector<1x128xf32> to vector<512x128xf32>
    %59 = arith.mulf %56, %58 : vector<512x128xf32>
    %c0_36 = arith.constant 0 : index
    %c0_37 = arith.constant 0 : index
    %60 = vector.load %arg12[%c0_36, %c0_37] : memref<1x128xf32, #tpu.memory_space<vmem>>, vector<1x128xf32>
    %61 = vector.broadcast %60 : vector<1x128xf32> to vector<512x128xf32>
    %62 = arith.addf %59, %61 : vector<512x128xf32>
    %63 = arith.truncf %62 : vector<512x128xf32> to vector<512x128xbf16>
    %c0_38 = arith.constant 0 : index
    %c0_39 = arith.constant 0 : index
    %64 = vector.load %arg14[%c0_38, %c0_39] : memref<512x128xbf16, #tpu.memory_space<vmem>>, vector<512x128xbf16>
    tpu.vector_store %arg14[%c0_38, %c0_39], %63 {strides = array<i32>} : memref<512x128xbf16, #tpu.memory_space<vmem>>, vector<512x128xbf16>,
    return
  }
  func.func @transform_0(%arg0: i32) -> (i32, i32) {
    %c0_i32 = arith.constant 0 : i32
    %c0_i32_0 = arith.constant 0 : i32
    return %c0_i32, %arg0 : i32, i32
  }
  func.func @transform_1(%arg0: i32) -> (i32, i32) {
    %c0_i32 = arith.constant 0 : i32
    %c0_i32_0 = arith.constant 0 : i32
    return %arg0, %c0_i32 : i32, i32
  }
  func.func @transform_2(%arg0: i32) -> (i32, i32) {
    %c0_i32 = arith.constant 0 : i32
    %c0_i32_0 = arith.constant 0 : i32
    %c0_i32_1 = arith.constant 0 : i32
    return %c0_i32, %c0_i32_0 : i32, i32
  }
  func.func @transform_3(%arg0: i32) -> (i32, i32) {
    %c0_i32 = arith.constant 0 : i32
    %c0_i32_0 = arith.constant 0 : i32
    %c0_i32_1 = arith.constant 0 : i32
    return %c0_i32, %c0_i32_0 : i32, i32
  }
  func.func @transform_4(%arg0: i32) -> (i32, i32) {
    %c0_i32 = arith.constant 0 : i32
    %c0_i32_0 = arith.constant 0 : i32
    %c0_i32_1 = arith.constant 0 : i32
    return %c0_i32, %c0_i32_0 : i32, i32
  }
  func.func @transform_5(%arg0: i32) -> (i32, i32) {
    %c0_i32 = arith.constant 0 : i32
    %c0_i32_0 = arith.constant 0 : i32
    %c0_i32_1 = arith.constant 0 : i32
    return %c0_i32, %c0_i32_0 : i32, i32
  }
  func.func @transform_6(%arg0: i32) -> (i32, i32) {
    %c0_i32 = arith.constant 0 : i32
    %c0_i32_0 = arith.constant 0 : i32
    %c0_i32_1 = arith.constant 0 : i32
    return %c0_i32, %c0_i32_0 : i32, i32
  }
  func.func @transform_7(%arg0: i32) -> (i32, i32) {
    %c0_i32 = arith.constant 0 : i32
    %c0_i32_0 = arith.constant 0 : i32
    %c0_i32_1 = arith.constant 0 : i32
    return %c0_i32, %c0_i32_0 : i32, i32
  }
  func.func @transform_8(%arg0: i32) -> (i32, i32) {
    %c0_i32 = arith.constant 0 : i32
    %c0_i32_0 = arith.constant 0 : i32
    %c0_i32_1 = arith.constant 0 : i32
    return %c0_i32, %c0_i32_0 : i32, i32
  }
  func.func @transform_9(%arg0: i32) -> (i32, i32) {
    %c0_i32 = arith.constant 0 : i32
    %c0_i32_0 = arith.constant 0 : i32
    %c0_i32_1 = arith.constant 0 : i32
    return %c0_i32, %c0_i32_0 : i32, i32
  }
  func.func @transform_10(%arg0: i32) -> (i32, i32) {
    %c0_i32 = arith.constant 0 : i32
    %c0_i32_0 = arith.constant 0 : i32
    %c0_i32_1 = arith.constant 0 : i32
    return %c0_i32, %c0_i32_0 : i32, i32
  }
  func.func @transform_11(%arg0: i32) -> (i32, i32) {
    %c0_i32 = arith.constant 0 : i32
    %c0_i32_0 = arith.constant 0 : i32
    %c0_i32_1 = arith.constant 0 : i32
    return %c0_i32, %c0_i32_0 : i32, i32
  }
  func.func @transform_12(%arg0: i32) -> (i32, i32) {
    %c0_i32 = arith.constant 0 : i32
    %c0_i32_0 = arith.constant 0 : i32
    return %c0_i32, %arg0 : i32, i32
  }
  func.func @transform_13(%arg0: i32) -> (i32, i32) {
    %c0_i32 = arith.constant 0 : i32
    %c0_i32_0 = arith.constant 0 : i32
    return %arg0, %c0_i32 : i32, i32
  }
}

</mosaic_0001>

<llo_original>
// kernel: tpu_custom_call.1
$region0: #{tpu_custom_call.1}
  #allocation0 [shape = 'u32[]', space=smem, size = 0x4, offset = 0x4, fixed_abs, tag = 'smem constant byte address 0x4 - core index']
  #allocation1 [shape = 'u32[144,128]{1,0:T(1,128)}', space=vmem, size = 0x12000, scoped, tag = 'internal scratch']
  %s0 = inlined_call_operand.vmem [shape: f32[8,512], index: 0, kind: input, shape index: {}]
  %s1 = inlined_call_operand.vmem [shape: f32[512,8], index: 1, kind: input, shape index: {}]
  %s2 = inlined_call_operand.vmem [shape: f32[32,8], index: 2, kind: input, shape index: {}]
  %s3 = inlined_call_operand.vmem [shape: f32[32,1], index: 3, kind: input, shape index: {}]
  %s4 = inlined_call_operand.vmem [shape: f32[64,32], index: 4, kind: input, shape index: {}]
  %s5 = inlined_call_operand.vmem [shape: f32[64,1], index: 5, kind: input, shape index: {}]
  %s6 = inlined_call_operand.vmem [shape: f32[8,64], index: 6, kind: input, shape index: {}]
  %s7 = inlined_call_operand.vmem [shape: f32[8,1], index: 7, kind: input, shape index: {}]
  %s8 = inlined_call_operand.vmem [shape: f32[8,128], index: 8, kind: input, shape index: {}]
  %s9 = inlined_call_operand.vmem [shape: f32[1,128], index: 9, kind: input, shape index: {}]
  %s10 = inlined_call_operand.vmem [shape: f32[1,128], index: 10, kind: input, shape index: {}]
  %s11 = inlined_call_operand.vmem [shape: f32[1,128], index: 11, kind: input, shape index: {}]
  %s12 = inlined_call_operand.hbm [shape: f32[8,512], index: 12, kind: output, shape index: {0}]
  %s13 = inlined_call_operand.hbm [shape: bf16[512,128], index: 13, kind: output, shape index: {1}]
  %14 = xla_tuple %s12, %s13
  %s15 = sld [smem:[#allocation0]]
  $region66: #{tpu_custom_call.1} parent=0
    _
  %s17 = ssub.s32 1, %s15
  %s18 = scalar_select 0, %s17, %s15
  $region1: #{tpu_custom_call.1} parent=0
    #allocation2 [shape = 'u8[16384]{0}', space=vmem, size = 0x4000, scoped, tag = 'output window, operand 0, single buffered']
    #allocation3 [shape = 's32[1]{0}', space=sflag, size = 0x4, scoped, tag = 'scoped memory for tpu_custom_call.1']
    #allocation4 [shape = 'u8[131072]{0}', space=vmem, size = 0x20000, scoped, tag = 'output window, operand 1, single buffered']
    #allocation5 [shape = 's32[1]{0}', space=sflag, size = 0x4, scoped, tag = 'scoped memory for tpu_custom_call.1']
    %19 = vsyncpa [#allocation3], 0
    %20 = vsyncpa [#allocation5], 0
    // Predicated region
    $region2: #{tpu_custom_call.1} parent=1 // pred_check
      _
    $region3: #{tpu_custom_call.1} parent=1 // pred_check_branch
      %22 = sbr.rel (0) target = $region5
    $region4: #{tpu_custom_call.1} parent=1 // pred_region
      _
    $region5: #{tpu_custom_call.1} parent=1 // pred_fallthru
      _
    // Predicated region
    $region6: #{tpu_custom_call.1} parent=1 // pred_check
      _
    $region7: #{tpu_custom_call.1} parent=1 // pred_check_branch
      %24 = sbr.rel (0) target = $region9
    $region8: #{tpu_custom_call.1} parent=1 // pred_region
      _
    $region9: #{tpu_custom_call.1} parent=1 // pred_fallthru
      _
    // Predicated region
    $region10: #{tpu_custom_call.1} parent=1 // pred_check
      _
    $region11: #{tpu_custom_call.1} parent=1 // pred_check_branch
      %26 = sbr.rel (0) target = $region13
    $region12: #{tpu_custom_call.1} parent=1 // pred_region
      _
    $region13: #{tpu_custom_call.1} parent=1 // pred_fallthru
      _
    // Predicated region
    $region14: #{tpu_custom_call.1} parent=1 // pred_check
      _
    $region15: #{tpu_custom_call.1} parent=1 // pred_check_branch
      %28 = sbr.rel (0) target = $region17
    $region16: #{tpu_custom_call.1} parent=1 // pred_region
      _
    $region17: #{tpu_custom_call.1} parent=1 // pred_fallthru
      _
    // Predicated region
    $region18: #{tpu_custom_call.1} parent=1 // pred_check
      _
    $region19: #{tpu_custom_call.1} parent=1 // pred_check_branch
      %30 = sbr.rel (0) target = $region21
    $region20: #{tpu_custom_call.1} parent=1 // pred_region
      _
    $region21: #{tpu_custom_call.1} parent=1 // pred_fallthru
      _
    // Predicated region
    $region22: #{tpu_custom_call.1} parent=1 // pred_check
      _
    $region23: #{tpu_custom_call.1} parent=1 // pred_check_branch
      %32 = sbr.rel (0) target = $region25
    $region24: #{tpu_custom_call.1} parent=1 // pred_region
      _
    $region25: #{tpu_custom_call.1} parent=1 // pred_fallthru
      _
    // Predicated region
    $region26: #{tpu_custom_call.1} parent=1 // pred_check
      _
    $region27: #{tpu_custom_call.1} parent=1 // pred_check_branch
      %34 = sbr.rel (0) target = $region29
    $region28: #{tpu_custom_call.1} parent=1 // pred_region
      _
    $region29: #{tpu_custom_call.1} parent=1 // pred_fallthru
      _
    // Predicated region
    $region30: #{tpu_custom_call.1} parent=1 // pred_check
      _
    $region31: #{tpu_custom_call.1} parent=1 // pred_check_branch
      %36 = sbr.rel (0) target = $region33
    $region32: #{tpu_custom_call.1} parent=1 // pred_region
      _
    $region33: #{tpu_custom_call.1} parent=1 // pred_fallthru
      _
    // Predicated region
    $region34: #{tpu_custom_call.1} parent=1 // pred_check
      _
    $region35: #{tpu_custom_call.1} parent=1 // pred_check_branch
      %38 = sbr.rel (0) target = $region37
    $region36: #{tpu_custom_call.1} parent=1 // pred_region
      _
    $region37: #{tpu_custom_call.1} parent=1 // pred_fallthru
      _
    // Predicated region
    $region38: #{tpu_custom_call.1} parent=1 // pred_check
      _
    $region39: #{tpu_custom_call.1} parent=1 // pred_check_branch
      %40 = sbr.rel (0) target = $region41
    $region40: #{tpu_custom_call.1} parent=1 // pred_region
      _
    $region41: #{tpu_custom_call.1} parent=1 // pred_fallthru
      _
    // Predicated region
    $region42: #{tpu_custom_call.1} parent=1 // pred_check
      _
    $region43: #{tpu_custom_call.1} parent=1 // pred_check_branch
      %42 = sbr.rel (0) target = $region45
    $region44: #{tpu_custom_call.1} parent=1 // pred_region
      _
    $region45: #{tpu_custom_call.1} parent=1 // pred_fallthru
      _
    // Predicated region
    $region46: #{tpu_custom_call.1} parent=1 // pred_check
      _
    $region47: #{tpu_custom_call.1} parent=1 // pred_check_branch
      %44 = sbr.rel (0) target = $region49
    $region48: #{tpu_custom_call.1} parent=1 // pred_region
      _
    $region49: #{tpu_custom_call.1} parent=1 // pred_fallthru
      _
    %v45 = vld [vmem:[%s0] sm:$0xff]
    %v46 = vld [vmem:[%s0 + $0x8] sm:$0xff]
    %v47 = vld [vmem:[%s0 + $0x10] sm:$0xff]
    %v48 = vld [vmem:[%s0 + $0x18] sm:$0xff]
    %v49 = vld [vmem:[%s2] sm:$0xff]
    %v50 = vld [vmem:[%s2 + $0x8] sm:$0xff]
    %v51 = vld [vmem:[%s2 + $0x10] sm:$0xff]
    %v52 = vld [vmem:[%s2 + $0x18] sm:$0xff]
    %v53 = vld [vmem:[%s3] sm:$0xff]
    %v54 = vld [vmem:[%s3 + $0x8] sm:$0xff]
    %v55 = vld [vmem:[%s3 + $0x10] sm:$0xff]
    %v56 = vld [vmem:[%s3 + $0x18] sm:$0xff]
    %58 = vset.pattern.permute.xlu0 0
    %59 = vperm.xlu0 %58, %v53
    %v60 = vpop.permute.xlu0 %59
    %63 = vset.pattern.permute.xlu0 0
    %64 = vperm.xlu0 %63, %v54
    %v65 = vpop.permute.xlu0 %64
    %68 = vset.pattern.permute.xlu0 0
    %69 = vperm.xlu0 %68, %v55
    %v70 = vpop.permute.xlu0 %69
    %73 = vset.pattern.permute.xlu0 0
    %74 = vperm.xlu0 %73, %v56
    %v75 = vpop.permute.xlu0 %74
    %vm77 = vcmask 64512
    %v79 = vsel %vm77, %v49, 0
    %v82 = vsel %vm77, %v50, 0
    %v85 = vsel %vm77, %v51, 0
    %v88 = vsel %vm77, %v52, 0
    %90 = vmatprep.subr.mxu0 0.0
    %91 = vmatpush1.msra.mxu0 0.0
    %92 = vmatprep.subr.mxu0 0.0
    %93 = vmatpush1.msra.mxu0 0.0
    %94 = vmatprep.subr.mxu0 0.0
    %95 = vmatpush1.msra.mxu0 0.0
    %96 = vmatprep.subr.mxu0 0.0
    %97 = vmatpush1.msra.mxu0 0.0
    %98 = vmatprep.subr.mxu0 0.0
    %99 = vmatpush1.msra.mxu0 0.0
    %100 = vmatprep.subr.mxu0 0.0
    %101 = vmatpush1.msra.mxu0 0.0
    %102 = vmatprep.subr.mxu0 0.0
    %103 = vmatpush1.msra.mxu0 0.0
    %104 = vmatprep.subr.mxu0 0.0
    %105 = vmatpush1.msra.mxu0 0.0
    %106 = vmatprep.subr.mxu0 0.0
    %107 = vmatpush1.msra.mxu0 0.0
    %108 = vmatprep.subr.mxu0 0.0
    %109 = vmatpush1.msra.mxu0 0.0
    %110 = vmatprep.subr.mxu0 0.0
    %111 = vmatpush1.msra.mxu0 0.0
    %112 = vmatprep.subr.mxu0 0.0
    %113 = vmatpush1.msra.mxu0 0.0
    %114 = vmatprep.subr.mxu0 0.0
    %115 = vmatpush1.msra.mxu0 0.0
    %116 = vmatprep.subr.mxu0 0.0
    %117 = vmatpush1.msra.mxu0 0.0
    %118 = vmatprep.subr.mxu0 0.0
    %119 = vmatpush1.msra.mxu0 0.0
    %120 = vmatprep.subr.mxu0 %v46
    %121 = vmatpush1.msra.mxu0 %v45
    %122 = vmatprep.subr.mxu0 0.0
    %123 = vmatpush2.msra.mxu0 0.0
    %124 = vmatprep.subr.mxu0 0.0
    %125 = vmatpush2.msra.mxu0 0.0
    %126 = vmatprep.subr.mxu0 0.0
    %127 = vmatpush2.msra.mxu0 0.0
    %128 = vmatprep.subr.mxu0 0.0
    %129 = vmatpush2.msra.mxu0 0.0
    %130 = vmatprep.subr.mxu0 0.0
    %131 = vmatpush2.msra.mxu0 0.0
    %132 = vmatprep.subr.mxu0 0.0
    %133 = vmatpush2.msra.mxu0 0.0
    %134 = vmatprep.subr.mxu0 0.0
    %135 = vmatpush2.msra.mxu0 0.0
    %136 = vmatprep.subr.mxu0 0.0
    %137 = vmatpush2.msra.mxu0 0.0
    %138 = vmatprep.subr.mxu0 0.0
    %139 = vmatpush2.msra.mxu0 0.0
    %140 = vmatprep.subr.mxu0 0.0
    %141 = vmatpush2.msra.mxu0 0.0
    %142 = vmatprep.subr.mxu0 0.0
    %143 = vmatpush2.msra.mxu0 0.0
    %144 = vmatprep.subr.mxu0 0.0
    %145 = vmatpush2.msra.mxu0 0.0
    %146 = vmatprep.subr.mxu0 0.0
    %147 = vmatpush2.msra.mxu0 0.0
    %148 = vmatprep.subr.mxu0 0.0
    %149 = vmatpush2.msra.mxu0 0.0
    %150 = vmatprep.subr.mxu0 0.0
    %151 = vmatpush2.msra.mxu0 0.0
    %152 = vmatprep.subr.mxu0 0.0
    %153 = vmatpush2.msra.mxu0 0.0
    %154 = vmatprep.mubr.f32.mxu0 0.0
    %155 = vmatmul.mubr.f32.gmra.mxu0 %v79
    %v156 = vpop.f32.mrf.mxu0
    %v157 = vadd.f32 %v60, %v156
    %v158 = vpop.f32.mrf.mxu0
    %v159 = vadd.f32 %v60, %v158
    %160 = vmatprep.mubr.f32.mxu0 0.0
    %161 = vmatmul.mubr.f32.gmra.mxu0 %v82
    %v162 = vpop.f32.mrf.mxu0
    %v163 = vadd.f32 %v65, %v162
    %v164 = vpop.f32.mrf.mxu0
    %v165 = vadd.f32 %v65, %v164
    %166 = vmatprep.mubr.f32.mxu0 0.0
    %167 = vmatmul.mubr.f32.gmra.mxu0 %v85
    %v168 = vpop.f32.mrf.mxu0
    %v169 = vadd.f32 %v70, %v168
    %v170 = vpop.f32.mrf.mxu0
    %v171 = vadd.f32 %v70, %v170
    %172 = vmatprep.mubr.f32.mxu0 0.0
    %173 = vmatmul.mubr.f32.gmra.mxu0 %v88
    %v174 = vpop.f32.mrf.mxu0
    %v175 = vadd.f32 %v75, %v174
    %v176 = vpop.f32.mrf.mxu0
    %v177 = vadd.f32 %v75, %v176
    %178 = vdwg.mxu0
    %179 = vmatprep.subr.mxu0 0.0
    %180 = vmatpush1.msra.mxu0 0.0
    %181 = vmatprep.subr.mxu0 0.0
    %182 = vmatpush1.msra.mxu0 0.0
    %183 = vmatprep.subr.mxu0 0.0
    %184 = vmatpush1.msra.mxu0 0.0
    %185 = vmatprep.subr.mxu0 0.0
    %186 = vmatpush1.msra.mxu0 0.0
    %187 = vmatprep.subr.mxu0 0.0
    %188 = vmatpush1.msra.mxu0 0.0
    %189 = vmatprep.subr.mxu0 0.0
    %190 = vmatpush1.msra.mxu0 0.0
    %191 = vmatprep.subr.mxu0 0.0
    %192 = vmatpush1.msra.mxu0 0.0
    %193 = vmatprep.subr.mxu0 0.0
    %194 = vmatpush1.msra.mxu0 0.0
    %195 = vmatprep.subr.mxu0 0.0
    %196 = vmatpush1.msra.mxu0 0.0
    %197 = vmatprep.subr.mxu0 0.0
    %198 = vmatpush1.msra.mxu0 0.0
    %199 = vmatprep.subr.mxu0 0.0
    %200 = vmatpush1.msra.mxu0 0.0
    %201 = vmatprep.subr.mxu0 0.0
    %202 = vmatpush1.msra.mxu0 0.0
    %203 = vmatprep.subr.mxu0 0.0
    %204 = vmatpush1.msra.mxu0 0.0
    %205 = vmatprep.subr.mxu0 0.0
    %206 = vmatpush1.msra.mxu0 0.0
    %207 = vmatprep.subr.mxu0 0.0
    %208 = vmatpush1.msra.mxu0 0.0
    %209 = vmatprep.subr.mxu0 %v48
    %210 = vmatpush1.msra.mxu0 %v47
    %211 = vmatprep.subr.mxu0 0.0
    %212 = vmatpush2.msra.mxu0 0.0
    %213 = vmatprep.subr.mxu0 0.0
    %214 = vmatpush2.msra.mxu0 0.0
    %215 = vmatprep.subr.mxu0 0.0
    %216 = vmatpush2.msra.mxu0 0.0
    %217 = vmatprep.subr.mxu0 0.0
    %218 = vmatpush2.msra.mxu0 0.0
    %219 = vmatprep.subr.mxu0 0.0
    %220 = vmatpush2.msra.mxu0 0.0
    %221 = vmatprep.subr.mxu0 0.0
    %222 = vmatpush2.msra.mxu0 0.0
    %223 = vmatprep.subr.mxu0 0.0
    %224 = vmatpush2.msra.mxu0 0.0
    %225 = vmatprep.subr.mxu0 0.0
    %226 = vmatpush2.msra.mxu0 0.0
    %227 = vmatprep.subr.mxu0 0.0
    %228 = vmatpush2.msra.mxu0 0.0
    %229 = vmatprep.subr.mxu0 0.0
    %230 = vmatpush2.msra.mxu0 0.0
    %231 = vmatprep.subr.mxu0 0.0
    %232 = vmatpush2.msra.mxu0 0.0
    %233 = vmatprep.subr.mxu0 0.0
    %234 = vmatpush2.msra.mxu0 0.0
    %235 = vmatprep.subr.mxu0 0.0
    %236 = vmatpush2.msra.mxu0 0.0
    %237 = vmatprep.subr.mxu0 0.0
    %238 = vmatpush2.msra.mxu0 0.0
    %239 = vmatprep.subr.mxu0 0.0
    %240 = vmatpush2.msra.mxu0 0.0
    %241 = vmatprep.subr.mxu0 0.0
    %242 = vmatpush2.msra.mxu0 0.0
    %243 = vmatprep.mubr.f32.mxu0 0.0
    %244 = vmatmul.mubr.f32.gmra.mxu0 %v79
    %v245 = vpop.f32.mrf.mxu0
    %v246 = vadd.f32 %v60, %v245
    %v247 = vpop.f32.mrf.mxu0
    %v248 = vadd.f32 %v60, %v247
    %249 = vmatprep.mubr.f32.mxu0 0.0
    %250 = vmatmul.mubr.f32.gmra.mxu0 %v82
    %v251 = vpop.f32.mrf.mxu0
    %v252 = vadd.f32 %v65, %v251
    %v253 = vpop.f32.mrf.mxu0
    %v254 = vadd.f32 %v65, %v253
    %255 = vmatprep.mubr.f32.mxu0 0.0
    %256 = vmatmul.mubr.f32.gmra.mxu0 %v85
    %v257 = vpop.f32.mrf.mxu0
    %v258 = vadd.f32 %v70, %v257
    %v259 = vpop.f32.mrf.mxu0
    %v260 = vadd.f32 %v70, %v259
    %261 = vmatprep.mubr.f32.mxu0 0.0
    %262 = vmatmul.mubr.f32.gmra.mxu0 %v88
    %v263 = vpop.f32.mrf.mxu0
    %v264 = vadd.f32 %v75, %v263
    %v265 = vpop.f32.mrf.mxu0
    %v266 = vadd.f32 %v75, %v265
    %267 = vdwg.mxu0
    %v268 = vmax.f32 %v157, 0.0
    %v269 = vmax.f32 %v159, 0.0
    %v270 = vmax.f32 %v246, 0.0
    %v271 = vmax.f32 %v248, 0.0
    %v272 = vmax.f32 %v163, 0.0
    %v273 = vmax.f32 %v165, 0.0
    %v274 = vmax.f32 %v252, 0.0
    %v275 = vmax.f32 %v254, 0.0
    %v276 = vmax.f32 %v169, 0.0
    %v277 = vmax.f32 %v171, 0.0
    %v278 = vmax.f32 %v258, 0.0
    %v279 = vmax.f32 %v260, 0.0
    %v280 = vmax.f32 %v175, 0.0
    %v281 = vmax.f32 %v177, 0.0
    %v282 = vmax.f32 %v264, 0.0
    %v283 = vmax.f32 %v266, 0.0
    %v284 = vld [vmem:[%s4] sm:$0xff]
    %v285 = vld [vmem:[%s4 + $0x8] sm:$0xff]
    %v286 = vld [vmem:[%s4 + $0x10] sm:$0xff]
    %v287 = vld [vmem:[%s4 + $0x18] sm:$0xff]
    %v288 = vld [vmem:[%s4 + $0x20] sm:$0xff]
    %v289 = vld [vmem:[%s4 + $0x28] sm:$0xff]
    %v290 = vld [vmem:[%s4 + $0x30] sm:$0xff]
    %v291 = vld [vmem:[%s4 + $0x38] sm:$0xff]
    %v292 = vld [vmem:[%s5] sm:$0xff]
    %v293 = vld [vmem:[%s5 + $0x8] sm:$0xff]
    %v294 = vld [vmem:[%s5 + $0x10] sm:$0xff]
    %v295 = vld [vmem:[%s5 + $0x18] sm:$0xff]
    %v296 = vld [vmem:[%s5 + $0x20] sm:$0xff]
    %v297 = vld [vmem:[%s5 + $0x28] sm:$0xff]
    %v298 = vld [vmem:[%s5 + $0x30] sm:$0xff]
    %v299 = vld [vmem:[%s5 + $0x38] sm:$0xff]
    %301 = vset.pattern.permute.xlu0 0
    %302 = vperm.xlu0 %301, %v292
    %v303 = vpop.permute.xlu0 %302
    %306 = vset.pattern.permute.xlu0 0
    %307 = vperm.xlu0 %306, %v293
    %v308 = vpop.permute.xlu0 %307
    %311 = vset.pattern.permute.xlu0 0
    %312 = vperm.xlu0 %311, %v294
    %v313 = vpop.permute.xlu0 %312
    %316 = vset.pattern.permute.xlu0 0
    %317 = vperm.xlu0 %316, %v295
    %v318 = vpop.permute.xlu0 %317
    %321 = vset.pattern.permute.xlu0 0
    %322 = vperm.xlu0 %321, %v296
    %v323 = vpop.permute.xlu0 %322
    %326 = vset.pattern.permute.xlu0 0
    %327 = vperm.xlu0 %326, %v297
    %v328 = vpop.permute.xlu0 %327
    %331 = vset.pattern.permute.xlu0 0
    %332 = vperm.xlu0 %331, %v298
    %v333 = vpop.permute.xlu0 %332
    %336 = vset.pattern.permute.xlu0 0
    %337 = vperm.xlu0 %336, %v299
    %v338 = vpop.permute.xlu0 %337
    %vm340 = vcmask 261120
    %v342 = vsel %vm340, %v284, 0
    %v345 = vsel %vm340, %v285, 0
    %v348 = vsel %vm340, %v286, 0
    %v351 = vsel %vm340, %v287, 0
    %v354 = vsel %vm340, %v288, 0
    %v357 = vsel %vm340, %v289, 0
    %v360 = vsel %vm340, %v290, 0
    %v363 = vsel %vm340, %v291, 0
    %365 = vmatprep.subr.mxu0 0.0
    %366 = vmatpush1.msra.mxu0 0.0
    %367 = vmatprep.subr.mxu0 0.0
    %368 = vmatpush1.msra.mxu0 0.0
    %369 = vmatprep.subr.mxu0 0.0
    %370 = vmatpush1.msra.mxu0 0.0
    %371 = vmatprep.subr.mxu0 0.0
    %372 = vmatpush1.msra.mxu0 0.0
    %373 = vmatprep.subr.mxu0 0.0
    %374 = vmatpush1.msra.mxu0 0.0
    %375 = vmatprep.subr.mxu0 0.0
    %376 = vmatpush1.msra.mxu0 0.0
    %377 = vmatprep.subr.mxu0 0.0
    %378 = vmatpush1.msra.mxu0 0.0
    %379 = vmatprep.subr.mxu0 0.0
    %380 = vmatpush1.msra.mxu0 0.0
    %381 = vmatprep.subr.mxu0 0.0
    %382 = vmatpush1.msra.mxu0 0.0
    %383 = vmatprep.subr.mxu0 0.0
    %384 = vmatpush1.msra.mxu0 0.0
    %385 = vmatprep.subr.mxu0 0.0
    %386 = vmatpush1.msra.mxu0 0.0
    %387 = vmatprep.subr.mxu0 0.0
    %388 = vmatpush1.msra.mxu0 0.0
    %389 = vmatprep.subr.mxu0 %v281
    %390 = vmatpush1.msra.mxu0 %v280
    %391 = vmatprep.subr.mxu0 %v277
    %392 = vmatpush1.msra.mxu0 %v276
    %393 = vmatprep.subr.mxu0 %v273
    %394 = vmatpush1.msra.mxu0 %v272
    %395 = vmatprep.subr.mxu0 %v269
    %396 = vmatpush1.msra.mxu0 %v268
    %397 = vmatprep.subr.mxu0 0.0
    %398 = vmatpush2.msra.mxu0 0.0
    %399 = vmatprep.subr.mxu0 0.0
    %400 = vmatpush2.msra.mxu0 0.0
    %401 = vmatprep.subr.mxu0 0.0
    %402 = vmatpush2.msra.mxu0 0.0
    %403 = vmatprep.subr.mxu0 0.0
    %404 = vmatpush2.msra.mxu0 0.0
    %405 = vmatprep.subr.mxu0 0.0
    %406 = vmatpush2.msra.mxu0 0.0
    %407 = vmatprep.subr.mxu0 0.0
    %408 = vmatpush2.msra.mxu0 0.0
    %409 = vmatprep.subr.mxu0 0.0
    %410 = vmatpush2.msra.mxu0 0.0
    %411 = vmatprep.subr.mxu0 0.0
    %412 = vmatpush2.msra.mxu0 0.0
    %413 = vmatprep.subr.mxu0 0.0
    %414 = vmatpush2.msra.mxu0 0.0
    %415 = vmatprep.subr.mxu0 0.0
    %416 = vmatpush2.msra.mxu0 0.0
    %417 = vmatprep.subr.mxu0 0.0
    %418 = vmatpush2.msra.mxu0 0.0
    %419 = vmatprep.subr.mxu0 0.0
    %420 = vmatpush2.msra.mxu0 0.0
    %421 = vmatprep.subr.mxu0 0.0
    %422 = vmatpush2.msra.mxu0 0.0
    %423 = vmatprep.subr.mxu0 0.0
    %424 = vmatpush2.msra.mxu0 0.0
    %425 = vmatprep.subr.mxu0 0.0
    %426 = vmatpush2.msra.mxu0 0.0
    %427 = vmatprep.subr.mxu0 0.0
    %428 = vmatpush2.msra.mxu0 0.0
    %429 = vmatprep.mubr.f32.mxu0 0.0
    %430 = vmatmul.mubr.f32.gmra.mxu0 %v342
    %v431 = vpop.f32.mrf.mxu0
    %v432 = vadd.f32 %v303, %v431
    %v433 = vpop.f32.mrf.mxu0
    %v434 = vadd.f32 %v303, %v433
    %435 = vmatprep.mubr.f32.mxu0 0.0
    %436 = vmatmul.mubr.f32.gmra.mxu0 %v345
    %v437 = vpop.f32.mrf.mxu0
    %v438 = vadd.f32 %v308, %v437
    %v439 = vpop.f32.mrf.mxu0
    %v440 = vadd.f32 %v308, %v439
    %441 = vmatprep.mubr.f32.mxu0 0.0
    %442 = vmatmul.mubr.f32.gmra.mxu0 %v348
    %v443 = vpop.f32.mrf.mxu0
    %v444 = vadd.f32 %v313, %v443
    %v445 = vpop.f32.mrf.mxu0
    %v446 = vadd.f32 %v313, %v445
    %447 = vmatprep.mubr.f32.mxu0 0.0
    %448 = vmatmul.mubr.f32.gmra.mxu0 %v351
    %v449 = vpop.f32.mrf.mxu0
    %v450 = vadd.f32 %v318, %v449
    %v451 = vpop.f32.mrf.mxu0
    %v452 = vadd.f32 %v318, %v451
    %453 = vmatprep.mubr.f32.mxu0 0.0
    %454 = vmatmul.mubr.f32.gmra.mxu0 %v354
    %v455 = vpop.f32.mrf.mxu0
    %v456 = vadd.f32 %v323, %v455
    %v457 = vpop.f32.mrf.mxu0
    %v458 = vadd.f32 %v323, %v457
    %459 = vmatprep.mubr.f32.mxu0 0.0
    %460 = vmatmul.mubr.f32.gmra.mxu0 %v357
    %v461 = vpop.f32.mrf.mxu0
    %v462 = vadd.f32 %v328, %v461
    %v463 = vpop.f32.mrf.mxu0
    %v464 = vadd.f32 %v328, %v463
    %465 = vmatprep.mubr.f32.mxu0 0.0
    %466 = vmatmul.mubr.f32.gmra.mxu0 %v360
    %v467 = vpop.f32.mrf.mxu0
    %v468 = vadd.f32 %v333, %v467
    %v469 = vpop.f32.mrf.mxu0
    %v470 = vadd.f32 %v333, %v469
    %471 = vmatprep.mubr.f32.mxu0 0.0
    %472 = vmatmul.mubr.f32.gmra.mxu0 %v363
    %v473 = vpop.f32.mrf.mxu0
    %v474 = vadd.f32 %v338, %v473
    %v475 = vpop.f32.mrf.mxu0
    %v476 = vadd.f32 %v338, %v475
    %477 = vdwg.mxu0
    %478 = vmatprep.subr.mxu0 0.0
    %479 = vmatpush1.msra.mxu0 0.0
    %480 = vmatprep.subr.mxu0 0.0
    %481 = vmatpush1.msra.mxu0 0.0
    %482 = vmatprep.subr.mxu0 0.0
    %483 = vmatpush1.msra.mxu0 0.0
    %484 = vmatprep.subr.mxu0 0.0
    %485 = vmatpush1.msra.mxu0 0.0
    %486 = vmatprep.subr.mxu0 0.0
    %487 = vmatpush1.msra.mxu0 0.0
    %488 = vmatprep.subr.mxu0 0.0
    %489 = vmatpush1.msra.mxu0 0.0
    %490 = vmatprep.subr.mxu0 0.0
    %491 = vmatpush1.msra.mxu0 0.0
    %492 = vmatprep.subr.mxu0 0.0
    %493 = vmatpush1.msra.mxu0 0.0
    %494 = vmatprep.subr.mxu0 0.0
    %495 = vmatpush1.msra.mxu0 0.0
    %496 = vmatprep.subr.mxu0 0.0
    %497 = vmatpush1.msra.mxu0 0.0
    %498 = vmatprep.subr.mxu0 0.0
    %499 = vmatpush1.msra.mxu0 0.0
    %500 = vmatprep.subr.mxu0 0.0
    %501 = vmatpush1.msra.mxu0 0.0
    %502 = vmatprep.subr.mxu0 %v283
    %503 = vmatpush1.msra.mxu0 %v282
    %504 = vmatprep.subr.mxu0 %v279
    %505 = vmatpush1.msra.mxu0 %v278
    %506 = vmatprep.subr.mxu0 %v275
    %507 = vmatpush1.msra.mxu0 %v274
    %508 = vmatprep.subr.mxu0 %v271
    %509 = vmatpush1.msra.mxu0 %v270
    %510 = vmatprep.subr.mxu0 0.0
    %511 = vmatpush2.msra.mxu0 0.0
    %512 = vmatprep.subr.mxu0 0.0
    %513 = vmatpush2.msra.mxu0 0.0
    %514 = vmatprep.subr.mxu0 0.0
    %515 = vmatpush2.msra.mxu0 0.0
    %516 = vmatprep.subr.mxu0 0.0
    %517 = vmatpush2.msra.mxu0 0.0
    %518 = vmatprep.subr.mxu0 0.0
    %519 = vmatpush2.msra.mxu0 0.0
    %520 = vmatprep.subr.mxu0 0.0
    %521 = vmatpush2.msra.mxu0 0.0
    %522 = vmatprep.subr.mxu0 0.0
    %523 = vmatpush2.msra.mxu0 0.0
    %524 = vmatprep.subr.mxu0 0.0
    %525 = vmatpush2.msra.mxu0 0.0
    %526 = vmatprep.subr.mxu0 0.0
    %527 = vmatpush2.msra.mxu0 0.0
    %528 = vmatprep.subr.mxu0 0.0
    %529 = vmatpush2.msra.mxu0 0.0
    %530 = vmatprep.subr.mxu0 0.0
    %531 = vmatpush2.msra.mxu0 0.0
    %532 = vmatprep.subr.mxu0 0.0
    %533 = vmatpush2.msra.mxu0 0.0
    %534 = vmatprep.subr.mxu0 0.0
    %535 = vmatpush2.msra.mxu0 0.0
    %536 = vmatprep.subr.mxu0 0.0
    %537 = vmatpush2.msra.mxu0 0.0
    %538 = vmatprep.subr.mxu0 0.0
    %539 = vmatpush2.msra.mxu0 0.0
    %540 = vmatprep.subr.mxu0 0.0
    %541 = vmatpush2.msra.mxu0 0.0
    %542 = vmatprep.mubr.f32.mxu0 0.0
    %543 = vmatmul.mubr.f32.gmra.mxu0 %v342
    %v544 = vpop.f32.mrf.mxu0
    %v545 = vadd.f32 %v303, %v544
    %v546 = vpop.f32.mrf.mxu0
    %v547 = vadd.f32 %v303, %v546
    %548 = vmatprep.mubr.f32.mxu0 0.0
    %549 = vmatmul.mubr.f32.gmra.mxu0 %v345
    %v550 = vpop.f32.mrf.mxu0
    %v551 = vadd.f32 %v308, %v550
    %v552 = vpop.f32.mrf.mxu0
    %v553 = vadd.f32 %v308, %v552
    %554 = vmatprep.mubr.f32.mxu0 0.0
    %555 = vmatmul.mubr.f32.gmra.mxu0 %v348
    %v556 = vpop.f32.mrf.mxu0
    %v557 = vadd.f32 %v313, %v556
    %v558 = vpop.f32.mrf.mxu0
    %v559 = vadd.f32 %v313, %v558
    %560 = vmatprep.mubr.f32.mxu0 0.0
    %561 = vmatmul.mubr.f32.gmra.mxu0 %v351
    %v562 = vpop.f32.mrf.mxu0
    %v563 = vadd.f32 %v318, %v562
    %v564 = vpop.f32.mrf.mxu0
    %v565 = vadd.f32 %v318, %v564
    %566 = vmatprep.mubr.f32.mxu0 0.0
    %567 = vmatmul.mubr.f32.gmra.mxu0 %v354
    %v568 = vpop.f32.mrf.mxu0
    %v569 = vadd.f32 %v323, %v568
    %v570 = vpop.f32.mrf.mxu0
    %v571 = vadd.f32 %v323, %v570
    %572 = vmatprep.mubr.f32.mxu0 0.0
    %573 = vmatmul.mubr.f32.gmra.mxu0 %v357
    %v574 = vpop.f32.mrf.mxu0
    %v575 = vadd.f32 %v328, %v574
    %v576 = vpop.f32.mrf.mxu0
    %v577 = vadd.f32 %v328, %v576
    %578 = vmatprep.mubr.f32.mxu0 0.0
    %579 = vmatmul.mubr.f32.gmra.mxu0 %v360
    %v580 = vpop.f32.mrf.mxu0
    %v581 = vadd.f32 %v333, %v580
    %v582 = vpop.f32.mrf.mxu0
    %v583 = vadd.f32 %v333, %v582
    %584 = vmatprep.mubr.f32.mxu0 0.0
    %585 = vmatmul.mubr.f32.gmra.mxu0 %v363
    %v586 = vpop.f32.mrf.mxu0
    %v587 = vadd.f32 %v338, %v586
    %v588 = vpop.f32.mrf.mxu0
    %v589 = vadd.f32 %v338, %v588
    %590 = vdwg.mxu0
    %v591 = vmax.f32 %v432, 0.0
    %v592 = vmax.f32 %v434, 0.0
    %v593 = vmax.f32 %v545, 0.0
    %v594 = vmax.f32 %v547, 0.0
    %v595 = vmax.f32 %v438, 0.0
    %v596 = vmax.f32 %v440, 0.0
    %v597 = vmax.f32 %v551, 0.0
    %v598 = vmax.f32 %v553, 0.0
    %v599 = vmax.f32 %v444, 0.0
    %v600 = vmax.f32 %v446, 0.0
    %v601 = vmax.f32 %v557, 0.0
    %v602 = vmax.f32 %v559, 0.0
    %v603 = vmax.f32 %v450, 0.0
    %v604 = vmax.f32 %v452, 0.0
    %v605 = vmax.f32 %v563, 0.0
    %v606 = vmax.f32 %v565, 0.0
    %v607 = vmax.f32 %v456, 0.0
    %v608 = vmax.f32 %v458, 0.0
    %v609 = vmax.f32 %v569, 0.0
    %v610 = vmax.f32 %v571, 0.0
    %v611 = vmax.f32 %v462, 0.0
    %v612 = vmax.f32 %v464, 0.0
    %v613 = vmax.f32 %v575, 0.0
    %v614 = vmax.f32 %v577, 0.0
    %v615 = vmax.f32 %v468, 0.0
    %v616 = vmax.f32 %v470, 0.0
    %v617 = vmax.f32 %v581, 0.0
    %v618 = vmax.f32 %v583, 0.0
    %v619 = vmax.f32 %v474, 0.0
    %v620 = vmax.f32 %v476, 0.0
    %v621 = vmax.f32 %v587, 0.0
    %v622 = vmax.f32 %v589, 0.0
    %v623 = vld [vmem:[%s6] sm:$0xff]
    %v624 = vld [vmem:[%s7] sm:$0xff]
    %626 = vset.pattern.permute.xlu0 0
    %627 = vperm.xlu0 %626, %v624
    %v628 = vpop.permute.xlu0 %627
    %vm630 = vcmask 523264
    %v632 = vsel %vm630, %v623, 0
    %634 = vmatprep.subr.mxu0 0.0
    %635 = vmatpush1.msra.mxu0 0.0
    %636 = vmatprep.subr.mxu0 0.0
    %637 = vmatpush1.msra.mxu0 0.0
    %638 = vmatprep.subr.mxu0 0.0
    %639 = vmatpush1.msra.mxu0 0.0
    %640 = vmatprep.subr.mxu0 0.0
    %641 = vmatpush1.msra.mxu0 0.0
    %642 = vmatprep.subr.mxu0 0.0
    %643 = vmatpush1.msra.mxu0 0.0
    %644 = vmatprep.subr.mxu0 0.0
    %645 = vmatpush1.msra.mxu0 0.0
    %646 = vmatprep.subr.mxu0 0.0
    %647 = vmatpush1.msra.mxu0 0.0
    %648 = vmatprep.subr.mxu0 0.0
    %649 = vmatpush1.msra.mxu0 0.0
    %650 = vmatprep.subr.mxu0 %v620
    %651 = vmatpush1.msra.mxu0 %v619
    %652 = vmatprep.subr.mxu0 %v616
    %653 = vmatpush1.msra.mxu0 %v615
    %654 = vmatprep.subr.mxu0 %v612
    %655 = vmatpush1.msra.mxu0 %v611
    %656 = vmatprep.subr.mxu0 %v608
    %657 = vmatpush1.msra.mxu0 %v607
    %658 = vmatprep.subr.mxu0 %v604
    %659 = vmatpush1.msra.mxu0 %v603
    %660 = vmatprep.subr.mxu0 %v600
    %661 = vmatpush1.msra.mxu0 %v599
    %662 = vmatprep.subr.mxu0 %v596
    %663 = vmatpush1.msra.mxu0 %v595
    %664 = vmatprep.subr.mxu0 %v592
    %665 = vmatpush1.msra.mxu0 %v591
    %666 = vmatprep.subr.mxu0 0.0
    %667 = vmatpush2.msra.mxu0 0.0
    %668 = vmatprep.subr.mxu0 0.0
    %669 = vmatpush2.msra.mxu0 0.0
    %670 = vmatprep.subr.mxu0 0.0
    %671 = vmatpush2.msra.mxu0 0.0
    %672 = vmatprep.subr.mxu0 0.0
    %673 = vmatpush2.msra.mxu0 0.0
    %674 = vmatprep.subr.mxu0 0.0
    %675 = vmatpush2.msra.mxu0 0.0
    %676 = vmatprep.subr.mxu0 0.0
    %677 = vmatpush2.msra.mxu0 0.0
    %678 = vmatprep.subr.mxu0 0.0
    %679 = vmatpush2.msra.mxu0 0.0
    %680 = vmatprep.subr.mxu0 0.0
    %681 = vmatpush2.msra.mxu0 0.0
    %682 = vmatprep.subr.mxu0 0.0
    %683 = vmatpush2.msra.mxu0 0.0
    %684 = vmatprep.subr.mxu0 0.0
    %685 = vmatpush2.msra.mxu0 0.0
    %686 = vmatprep.subr.mxu0 0.0
    %687 = vmatpush2.msra.mxu0 0.0
    %688 = vmatprep.subr.mxu0 0.0
    %689 = vmatpush2.msra.mxu0 0.0
    %690 = vmatprep.subr.mxu0 0.0
    %691 = vmatpush2.msra.mxu0 0.0
    %692 = vmatprep.subr.mxu0 0.0
    %693 = vmatpush2.msra.mxu0 0.0
    %694 = vmatprep.subr.mxu0 0.0
    %695 = vmatpush2.msra.mxu0 0.0
    %696 = vmatprep.subr.mxu0 0.0
    %697 = vmatpush2.msra.mxu0 0.0
    %698 = vmatprep.mubr.f32.mxu0 0.0
    %699 = vmatmul.mubr.f32.gmra.mxu0 %v632
    %v700 = vpop.f32.mrf.mxu0
    %v701 = vadd.f32 %v628, %v700
    %v702 = vpop.f32.mrf.mxu0
    %v703 = vadd.f32 %v628, %v702
    %704 = vdwg.mxu0
    %705 = vmatprep.subr.mxu0 0.0
    %706 = vmatpush1.msra.mxu0 0.0
    %707 = vmatprep.subr.mxu0 0.0
    %708 = vmatpush1.msra.mxu0 0.0
    %709 = vmatprep.subr.mxu0 0.0
    %710 = vmatpush1.msra.mxu0 0.0
    %711 = vmatprep.subr.mxu0 0.0
    %712 = vmatpush1.msra.mxu0 0.0
    %713 = vmatprep.subr.mxu0 0.0
    %714 = vmatpush1.msra.mxu0 0.0
    %715 = vmatprep.subr.mxu0 0.0
    %716 = vmatpush1.msra.mxu0 0.0
    %717 = vmatprep.subr.mxu0 0.0
    %718 = vmatpush1.msra.mxu0 0.0
    %719 = vmatprep.subr.mxu0 0.0
    %720 = vmatpush1.msra.mxu0 0.0
    %721 = vmatprep.subr.mxu0 %v622
    %722 = vmatpush1.msra.mxu0 %v621
    %723 = vmatprep.subr.mxu0 %v618
    %724 = vmatpush1.msra.mxu0 %v617
    %725 = vmatprep.subr.mxu0 %v614
    %726 = vmatpush1.msra.mxu0 %v613
    %727 = vmatprep.subr.mxu0 %v610
    %728 = vmatpush1.msra.mxu0 %v609
    %729 = vmatprep.subr.mxu0 %v606
    %730 = vmatpush1.msra.mxu0 %v605
    %731 = vmatprep.subr.mxu0 %v602
    %732 = vmatpush1.msra.mxu0 %v601
    %733 = vmatprep.subr.mxu0 %v598
    %734 = vmatpush1.msra.mxu0 %v597
    %735 = vmatprep.subr.mxu0 %v594
    %736 = vmatpush1.msra.mxu0 %v593
    %737 = vmatprep.subr.mxu0 0.0
    %738 = vmatpush2.msra.mxu0 0.0
    %739 = vmatprep.subr.mxu0 0.0
    %740 = vmatpush2.msra.mxu0 0.0
    %741 = vmatprep.subr.mxu0 0.0
    %742 = vmatpush2.msra.mxu0 0.0
    %743 = vmatprep.subr.mxu0 0.0
    %744 = vmatpush2.msra.mxu0 0.0
    %745 = vmatprep.subr.mxu0 0.0
    %746 = vmatpush2.msra.mxu0 0.0
    %747 = vmatprep.subr.mxu0 0.0
    %748 = vmatpush2.msra.mxu0 0.0
    %749 = vmatprep.subr.mxu0 0.0
    %750 = vmatpush2.msra.mxu0 0.0
    %751 = vmatprep.subr.mxu0 0.0
    %752 = vmatpush2.msra.mxu0 0.0
    %753 = vmatprep.subr.mxu0 0.0
    %754 = vmatpush2.msra.mxu0 0.0
    %755 = vmatprep.subr.mxu0 0.0
    %756 = vmatpush2.msra.mxu0 0.0
    %757 = vmatprep.subr.mxu0 0.0
    %758 = vmatpush2.msra.mxu0 0.0
    %759 = vmatprep.subr.mxu0 0.0
    %760 = vmatpush2.msra.mxu0 0.0
    %761 = vmatprep.subr.mxu0 0.0
    %762 = vmatpush2.msra.mxu0 0.0
    %763 = vmatprep.subr.mxu0 0.0
    %764 = vmatpush2.msra.mxu0 0.0
    %765 = vmatprep.subr.mxu0 0.0
    %766 = vmatpush2.msra.mxu0 0.0
    %767 = vmatprep.subr.mxu0 0.0
    %768 = vmatpush2.msra.mxu0 0.0
    %769 = vmatprep.mubr.f32.mxu0 0.0
    %770 = vmatmul.mubr.f32.gmra.mxu0 %v632
    %v771 = vpop.f32.mrf.mxu0
    %v772 = vadd.f32 %v628, %v771
    %v773 = vpop.f32.mrf.mxu0
    %v774 = vadd.f32 %v628, %v773
    %775 = vdwg.mxu0
    %v776 = vtanh.pop %v701
    %v777 = vtanh.pop %v703
    %v778 = vtanh.pop %v772
    %v779 = vtanh.pop %v774
    %v780 = vmul.f32 %v776, 0.1
    %v781 = vmul.f32 %v777, 0.1
    %v782 = vmul.f32 %v778, 0.1
    %v783 = vmul.f32 %v779, 0.1
    %v784 = vadd.f32 %v45, %v780
    %v785 = vadd.f32 %v46, %v781
    %v786 = vadd.f32 %v47, %v782
    %v787 = vadd.f32 %v48, %v783
    %v788 = vmul.f32 %v784, %v784
    %v789 = vmul.f32 %v785, %v785
    %v790 = vmul.f32 %v786, %v786
    %v791 = vmul.f32 %v787, %v787
    %v796 = vrot.slane %v788, 1
    %v797 = vrot.slane %v789, 1
    %v798 = vrot.slane %v790, 1
    %v799 = vrot.slane %v791, 1
    %v804 = vadd.f32 %v788, %v796
    %v805 = vadd.f32 %v789, %v797
    %v806 = vadd.f32 %v790, %v798
    %v807 = vadd.f32 %v791, %v799
    %v808 = vrot.slane %v788, 2
    %v809 = vrot.slane %v789, 2
    %v810 = vrot.slane %v790, 2
    %v811 = vrot.slane %v791, 2
    %v816 = vadd.f32 %v804, %v808
    %v817 = vadd.f32 %v805, %v809
    %v818 = vadd.f32 %v806, %v810
    %v819 = vadd.f32 %v807, %v811
    %v820 = vlaneseq
    %v821 = vand.u32 %v820, 127
    %v822 = vadd.s32 %v821, 128
    %v823 = vadd.s32 %v821, 256
    %v824 = vadd.s32 %v821, 384
    %s825 = smul.u32 0, 512
    %v826 = vstv %s825
    %v827 = vadd.s32 %v821, %v826
    %v828 = vadd.s32 %v822, %v826
    %v829 = vadd.s32 %v823, %v826
    %v830 = vadd.s32 %v824, %v826
    %vm831 = vcmp.lt.s32.totalorder %v827, 64
    %vm832 = vcmp.lt.s32.totalorder %v828, 64
    %vm833 = vcmp.lt.s32.totalorder %v829, 64
    %vm834 = vcmp.lt.s32.totalorder %v830, 64
    %v835 = vsel %vm831, %v816, 1e+30
    %v836 = vsel %vm832, %v817, 1e+30
    %v837 = vsel %vm833, %v818, 1e+30
    %v838 = vsel %vm834, %v819, 1e+30
    %v839 = vmul.f32 %v784, -2.0
    %v840 = vmul.f32 %v785, -2.0
    %v841 = vmul.f32 %v786, -2.0
    %v842 = vmul.f32 %v787, -2.0
    %843 = vst [vmem:[#allocation2] sm:$0x7] %v839
    %844 = vst [vmem:[#allocation2 + $0x8] sm:$0x7] %v840
    %845 = vst [vmem:[#allocation2 + $0x10] sm:$0x7] %v841
    %846 = vst [vmem:[#allocation2 + $0x18] sm:$0x7] %v842
    %v851 = vcombine.low %v835, %v836
    %v852 = vcombine.low %v837, %v838
    %v854 = vunpack.c.l.s4 1966171168
    %v855 = vunpack.c.0.s8 %v854
    %v856 = vlaneseq
    %v857 = vshrl.u32 %v856, 7
    %v858 = vsub.s32 %v855, %v857
    %v859 = vrot.slane %v851, %v858
    %v861 = vunpack.c.l.s4 1966171168
    %v862 = vunpack.c.0.s8 %v861
    %v863 = vlaneseq
    %v864 = vshrl.u32 %v863, 7
    %v865 = vsub.s32 %v862, %v864
    %v866 = vrot.slane %v852, %v865
    %v867 = vcombine.low %v859, %v866
    %v869 = vunpack.c.l.s4 1966171168
    %v870 = vunpack.c.0.s8 %v869
    %v871 = vlaneseq
    %v872 = vshrl.u32 %v871, 7
    %v873 = vsub.s32 %v870, %v872
    %v874 = vrot.slane %v867, %v873
    %v876 = vlaneseq
    %vm877 = vcmp.ge.s32.totalorder %v876, 0
    %vm878 = vcmp.lt.s32.totalorder %v876, 512
    %vm879 = vmand %vm877, %vm878
    %s880 = scalar_lea.vmem [#allocation2], 3
    %881 = vst.msk [vmem:[%s880] ss:$8 sm:$0xf] %vm879, %v874
    %882 = vst.msk [vmem:[%s880] ss:$8 sm:$0x0] %vm879, %v874
    %v887 = vrot.slane %v784, 4
    %v888 = vrot.slane %v785, 4
    %v889 = vrot.slane %v786, 4
    %v890 = vrot.slane %v787, 4
    %895 = vst [vmem:[#allocation2] sm:$0x70] %v887
    %896 = vst [vmem:[#allocation2 + $0x8] sm:$0x70] %v888
    %897 = vst [vmem:[#allocation2 + $0x10] sm:$0x70] %v889
    %898 = vst [vmem:[#allocation2 + $0x18] sm:$0x70] %v890
    %s899 = scalar_lea.vmem [#allocation2], 7
    %900 = vst.msk [vmem:[%s899] ss:$8 sm:$0xf] %vm879, 0.0
    %901 = vst.msk [vmem:[%s899] ss:$8 sm:$0x0] %vm879, 0.0
    %v902 = vld [vmem:[%s1] sm:$0xff]
    %v903 = vld [vmem:[%s1 + $0x8] sm:$0xff]
    %v904 = vld [vmem:[%s1 + $0x10] sm:$0xff]
    %v905 = vld [vmem:[%s1 + $0x18] sm:$0xff]
    %v906 = vld [vmem:[%s1 + $0x20] sm:$0xff]
    %v907 = vld [vmem:[%s1 + $0x28] sm:$0xff]
    %v908 = vld [vmem:[%s1 + $0x30] sm:$0xff]
    %v909 = vld [vmem:[%s1 + $0x38] sm:$0xff]
    %v910 = vld [vmem:[%s1 + $0x40] sm:$0xff]
    %v911 = vld [vmem:[%s1 + $0x48] sm:$0xff]
    %v912 = vld [vmem:[%s1 + $0x50] sm:$0xff]
    %v913 = vld [vmem:[%s1 + $0x58] sm:$0xff]
    %v914 = vld [vmem:[%s1 + $0x60] sm:$0xff]
    %v915 = vld [vmem:[%s1 + $0x68] sm:$0xff]
    %v916 = vld [vmem:[%s1 + $0x70] sm:$0xff]
    %v917 = vld [vmem:[%s1 + $0x78] sm:$0xff]
    %v918 = vld [vmem:[%s1 + $0x80] sm:$0xff]
    %v919 = vld [vmem:[%s1 + $0x88] sm:$0xff]
    %v920 = vld [vmem:[%s1 + $0x90] sm:$0xff]
    %v921 = vld [vmem:[%s1 + $0x98] sm:$0xff]
    %v922 = vld [vmem:[%s1 + $0xa0] sm:$0xff]
    %v923 = vld [vmem:[%s1 + $0xa8] sm:$0xff]
    %v924 = vld [vmem:[%s1 + $0xb0] sm:$0xff]
    %v925 = vld [vmem:[%s1 + $0xb8] sm:$0xff]
    %v926 = vld [vmem:[%s1 + $0xc0] sm:$0xff]
    %v927 = vld [vmem:[%s1 + $0xc8] sm:$0xff]
    %v928 = vld [vmem:[%s1 + $0xd0] sm:$0xff]
    %v929 = vld [vmem:[%s1 + $0xd8] sm:$0xff]
    %v930 = vld [vmem:[%s1 + $0xe0] sm:$0xff]
    %v931 = vld [vmem:[%s1 + $0xe8] sm:$0xff]
    %v932 = vld [vmem:[%s1 + $0xf0] sm:$0xff]
    %v933 = vld [vmem:[%s1 + $0xf8] sm:$0xff]
    %v934 = vld [vmem:[%s1 + $0x100] sm:$0xff]
    %v935 = vld [vmem:[%s1 + $0x108] sm:$0xff]
    %v936 = vld [vmem:[%s1 + $0x110] sm:$0xff]
    %v937 = vld [vmem:[%s1 + $0x118] sm:$0xff]
    %v938 = vld [vmem:[%s1 + $0x120] sm:$0xff]
    %v939 = vld [vmem:[%s1 + $0x128] sm:$0xff]
    %v940 = vld [vmem:[%s1 + $0x130] sm:$0xff]
    %v941 = vld [vmem:[%s1 + $0x138] sm:$0xff]
    %v942 = vld [vmem:[%s1 + $0x140] sm:$0xff]
    %v943 = vld [vmem:[%s1 + $0x148] sm:$0xff]
    %v944 = vld [vmem:[%s1 + $0x150] sm:$0xff]
    %v945 = vld [vmem:[%s1 + $0x158] sm:$0xff]
    %v946 = vld [vmem:[%s1 + $0x160] sm:$0xff]
    %v947 = vld [vmem:[%s1 + $0x168] sm:$0xff]
    %v948 = vld [vmem:[%s1 + $0x170] sm:$0xff]
    %v949 = vld [vmem:[%s1 + $0x178] sm:$0xff]
    %v950 = vld [vmem:[%s1 + $0x180] sm:$0xff]
    %v951 = vld [vmem:[%s1 + $0x188] sm:$0xff]
    %v952 = vld [vmem:[%s1 + $0x190] sm:$0xff]
    %v953 = vld [vmem:[%s1 + $0x198] sm:$0xff]
    %v954 = vld [vmem:[%s1 + $0x1a0] sm:$0xff]
    %v955 = vld [vmem:[%s1 + $0x1a8] sm:$0xff]
    %v956 = vld [vmem:[%s1 + $0x1b0] sm:$0xff]
    %v957 = vld [vmem:[%s1 + $0x1b8] sm:$0xff]
    %v958 = vld [vmem:[%s1 + $0x1c0] sm:$0xff]
    %v959 = vld [vmem:[%s1 + $0x1c8] sm:$0xff]
    %v960 = vld [vmem:[%s1 + $0x1d0] sm:$0xff]
    %v961 = vld [vmem:[%s1 + $0x1d8] sm:$0xff]
    %v962 = vld [vmem:[%s1 + $0x1e0] sm:$0xff]
    %v963 = vld [vmem:[%s1 + $0x1e8] sm:$0xff]
    %v964 = vld [vmem:[%s1 + $0x1f0] sm:$0xff]
    %v965 = vld [vmem:[%s1 + $0x1f8] sm:$0xff]
    %v966 = vld [vmem:[%s8] sm:$0xff]
    %v967 = vld [vmem:[%s9] sm:$0x1]
    %v969 = vlaneseq
    %v970 = vshrl.u32 %v969, 7
    %v971 = vsub.s32 0, %v970
    %v972 = vrot.slane %v967, %v971
    %v975 = vsel %vm77, %v902, 0
    %v978 = vsel %vm77, %v903, 0
    %v981 = vsel %vm77, %v904, 0
    %v984 = vsel %vm77, %v905, 0
    %v987 = vsel %vm77, %v906, 0
    %v990 = vsel %vm77, %v907, 0
    %v993 = vsel %vm77, %v908, 0
    %v996 = vsel %vm77, %v909, 0
    %v999 = vsel %vm77, %v910, 0
    %v1002 = vsel %vm77, %v911, 0
    %v1005 = vsel %vm77, %v912, 0
    %v1008 = vsel %vm77, %v913, 0
    %v1011 = vsel %vm77, %v914, 0
    %v1014 = vsel %vm77, %v915, 0
    %v1017 = vsel %vm77, %v916, 0
    %v1020 = vsel %vm77, %v917, 0
    %v1023 = vsel %vm77, %v918, 0
    %v1026 = vsel %vm77, %v919, 0
    %v1029 = vsel %vm77, %v920, 0
    %v1032 = vsel %vm77, %v921, 0
    %v1035 = vsel %vm77, %v922, 0
    %v1038 = vsel %vm77, %v923, 0
    %v1041 = vsel %vm77, %v924, 0
    %v1044 = vsel %vm77, %v925, 0
    %v1047 = vsel %vm77, %v926, 0
    %v1050 = vsel %vm77, %v927, 0
    %v1053 = vsel %vm77, %v928, 0
    %v1056 = vsel %vm77, %v929, 0
    %v1059 = vsel %vm77, %v930, 0
    %v1062 = vsel %vm77, %v931, 0
    %v1065 = vsel %vm77, %v932, 0
    %v1068 = vsel %vm77, %v933, 0
    %v1071 = vsel %vm77, %v934, 0
    %v1074 = vsel %vm77, %v935, 0
    %v1077 = vsel %vm77, %v936, 0
    %v1080 = vsel %vm77, %v937, 0
    %v1083 = vsel %vm77, %v938, 0
    %v1086 = vsel %vm77, %v939, 0
    %v1089 = vsel %vm77, %v940, 0
    %v1092 = vsel %vm77, %v941, 0
    %v1095 = vsel %vm77, %v942, 0
    %v1098 = vsel %vm77, %v943, 0
    %v1101 = vsel %vm77, %v944, 0
    %v1104 = vsel %vm77, %v945, 0
    %v1107 = vsel %vm77, %v946, 0
    %v1110 = vsel %vm77, %v947, 0
    %v1113 = vsel %vm77, %v948, 0
    %v1116 = vsel %vm77, %v949, 0
    %v1119 = vsel %vm77, %v950, 0
    %v1122 = vsel %vm77, %v951, 0
    %v1125 = vsel %vm77, %v952, 0
    %v1128 = vsel %vm77, %v953, 0
    %v1131 = vsel %vm77, %v954, 0
    %v1134 = vsel %vm77, %v955, 0
    %v1137 = vsel %vm77, %v956, 0
    %v1140 = vsel %vm77, %v957, 0
    %v1143 = vsel %vm77, %v958, 0
    %v1146 = vsel %vm77, %v959, 0
    %v1149 = vsel %vm77, %v960, 0
    %v1152 = vsel %vm77, %v961, 0
    %v1155 = vsel %vm77, %v962, 0
    %v1158 = vsel %vm77, %v963, 0
    %v1161 = vsel %vm77, %v964, 0
    %v1164 = vsel %vm77, %v965, 0
    %1166 = vmatprep.subr.mxu0 0.0
    %1167 = vmatpush1.msra.mxu0 0.0
    %1168 = vmatprep.subr.mxu0 0.0
    %1169 = vmatpush1.msra.mxu0 0.0
    %1170 = vmatprep.subr.mxu0 0.0
    %1171 = vmatpush1.msra.mxu0 0.0
    %1172 = vmatprep.subr.mxu0 0.0
    %1173 = vmatpush1.msra.mxu0 0.0
    %1174 = vmatprep.subr.mxu0 0.0
    %1175 = vmatpush1.msra.mxu0 0.0
    %1176 = vmatprep.subr.mxu0 0.0
    %1177 = vmatpush1.msra.mxu0 0.0
    %1178 = vmatprep.subr.mxu0 0.0
    %1179 = vmatpush1.msra.mxu0 0.0
    %1180 = vmatprep.subr.mxu0 0.0
    %1181 = vmatpush1.msra.mxu0 0.0
    %1182 = vmatprep.subr.mxu0 0.0
    %1183 = vmatpush1.msra.mxu0 0.0
    %1184 = vmatprep.subr.mxu0 0.0
    %1185 = vmatpush1.msra.mxu0 0.0
    %1186 = vmatprep.subr.mxu0 0.0
    %1187 = vmatpush1.msra.mxu0 0.0
    %1188 = vmatprep.subr.mxu0 0.0
    %1189 = vmatpush1.msra.mxu0 0.0
    %1190 = vmatprep.subr.mxu0 0.0
    %1191 = vmatpush1.msra.mxu0 0.0
    %1192 = vmatprep.subr.mxu0 0.0
    %1193 = vmatpush1.msra.mxu0 0.0
    %1194 = vmatprep.subr.mxu0 0.0
    %1195 = vmatpush1.msra.mxu0 0.0
    %1196 = vmatprep.subr.mxu0 0.0
    %1197 = vmatpush1.msra.mxu0 %v966
    %1198 = vmatprep.subr.mxu0 0.0
    %1199 = vmatpush2.msra.mxu0 0.0
    %1200 = vmatprep.subr.mxu0 0.0
    %1201 = vmatpush2.msra.mxu0 0.0
    %1202 = vmatprep.subr.mxu0 0.0
    %1203 = vmatpush2.msra.mxu0 0.0
    %1204 = vmatprep.subr.mxu0 0.0
    %1205 = vmatpush2.msra.mxu0 0.0
    %1206 = vmatprep.subr.mxu0 0.0
    %1207 = vmatpush2.msra.mxu0 0.0
    %1208 = vmatprep.subr.mxu0 0.0
    %1209 = vmatpush2.msra.mxu0 0.0
    %1210 = vmatprep.subr.mxu0 0.0
    %1211 = vmatpush2.msra.mxu0 0.0
    %1212 = vmatprep.subr.mxu0 0.0
    %1213 = vmatpush2.msra.mxu0 0.0
    %1214 = vmatprep.subr.mxu0 0.0
    %1215 = vmatpush2.msra.mxu0 0.0
    %1216 = vmatprep.subr.mxu0 0.0
    %1217 = vmatpush2.msra.mxu0 0.0
    %1218 = vmatprep.subr.mxu0 0.0
    %1219 = vmatpush2.msra.mxu0 0.0
    %1220 = vmatprep.subr.mxu0 0.0
    %1221 = vmatpush2.msra.mxu0 0.0
    %1222 = vmatprep.subr.mxu0 0.0
    %1223 = vmatpush2.msra.mxu0 0.0
    %1224 = vmatprep.subr.mxu0 0.0
    %1225 = vmatpush2.msra.mxu0 0.0
    %1226 = vmatprep.subr.mxu0 0.0
    %1227 = vmatpush2.msra.mxu0 0.0
    %1228 = vmatprep.subr.mxu0 0.0
    %1229 = vmatpush2.msra.mxu0 0.0
    %1230 = vmatprep.mubr.f32.mxu0 0.0
    %1231 = vmatmul.mubr.f32.gmra.mxu0 %v975
    %v1232 = vpop.f32.mrf.mxu0
    %v1233 = vadd.f32 %v972, %v1232
    %v1234 = vpop.f32.mrf.mxu0
    %1235 = vmatprep.mubr.f32.mxu0 0.0
    %1236 = vmatmul.mubr.f32.gmra.mxu0 %v978
    %v1237 = vpop.f32.mrf.mxu0
    %v1238 = vadd.f32 %v972, %v1237
    %v1239 = vpop.f32.mrf.mxu0
    %1240 = vmatprep.mubr.f32.mxu0 0.0
    %1241 = vmatmul.mubr.f32.gmra.mxu0 %v981
    %v1242 = vpop.f32.mrf.mxu0
    %v1243 = vadd.f32 %v972, %v1242
    %v1244 = vpop.f32.mrf.mxu0
    %1245 = vmatprep.mubr.f32.mxu0 0.0
    %1246 = vmatmul.mubr.f32.gmra.mxu0 %v984
    %v1247 = vpop.f32.mrf.mxu0
    %v1248 = vadd.f32 %v972, %v1247
    %v1249 = vpop.f32.mrf.mxu0
    %1250 = vmatprep.mubr.f32.mxu0 0.0
    %1251 = vmatmul.mubr.f32.gmra.mxu0 %v987
    %v1252 = vpop.f32.mrf.mxu0
    %v1253 = vadd.f32 %v972, %v1252
    %v1254 = vpop.f32.mrf.mxu0
    %1255 = vmatprep.mubr.f32.mxu0 0.0
    %1256 = vmatmul.mubr.f32.gmra.mxu0 %v990
    %v1257 = vpop.f32.mrf.mxu0
    %v1258 = vadd.f32 %v972, %v1257
    %v1259 = vpop.f32.mrf.mxu0
    %1260 = vmatprep.mubr.f32.mxu0 0.0
    %1261 = vmatmul.mubr.f32.gmra.mxu0 %v993
    %v1262 = vpop.f32.mrf.mxu0
    %v1263 = vadd.f32 %v972, %v1262
    %v1264 = vpop.f32.mrf.mxu0
    %1265 = vmatprep.mubr.f32.mxu0 0.0
    %1266 = vmatmul.mubr.f32.gmra.mxu0 %v996
    %v1267 = vpop.f32.mrf.mxu0
    %v1268 = vadd.f32 %v972, %v1267
    %v1269 = vpop.f32.mrf.mxu0
    %1270 = vmatprep.mubr.f32.mxu0 0.0
    %1271 = vmatmul.mubr.f32.gmra.mxu0 %v999
    %v1272 = vpop.f32.mrf.mxu0
    %v1273 = vadd.f32 %v972, %v1272
    %v1274 = vpop.f32.mrf.mxu0
    %1275 = vmatprep.mubr.f32.mxu0 0.0
    %1276 = vmatmul.mubr.f32.gmra.mxu0 %v1002
    %v1277 = vpop.f32.mrf.mxu0
    %v1278 = vadd.f32 %v972, %v1277
    %v1279 = vpop.f32.mrf.mxu0
    %1280 = vmatprep.mubr.f32.mxu0 0.0
    %1281 = vmatmul.mubr.f32.gmra.mxu0 %v1005
    %v1282 = vpop.f32.mrf.mxu0
    %v1283 = vadd.f32 %v972, %v1282
    %v1284 = vpop.f32.mrf.mxu0
    %1285 = vmatprep.mubr.f32.mxu0 0.0
    %1286 = vmatmul.mubr.f32.gmra.mxu0 %v1008
    %v1287 = vpop.f32.mrf.mxu0
    %v1288 = vadd.f32 %v972, %v1287
    %v1289 = vpop.f32.mrf.mxu0
    %1290 = vmatprep.mubr.f32.mxu0 0.0
    %1291 = vmatmul.mubr.f32.gmra.mxu0 %v1011
    %v1292 = vpop.f32.mrf.mxu0
    %v1293 = vadd.f32 %v972, %v1292
    %v1294 = vpop.f32.mrf.mxu0
    %1295 = vmatprep.mubr.f32.mxu0 0.0
    %1296 = vmatmul.mubr.f32.gmra.mxu0 %v1014
    %v1297 = vpop.f32.mrf.mxu0
    %v1298 = vadd.f32 %v972, %v1297
    %v1299 = vpop.f32.mrf.mxu0
    %1300 = vmatprep.mubr.f32.mxu0 0.0
    %1301 = vmatmul.mubr.f32.gmra.mxu0 %v1017
    %v1302 = vpop.f32.mrf.mxu0
    %v1303 = vadd.f32 %v972, %v1302
    %v1304 = vpop.f32.mrf.mxu0
    %1305 = vmatprep.mubr.f32.mxu0 0.0
    %1306 = vmatmul.mubr.f32.gmra.mxu0 %v1020
    %v1307 = vpop.f32.mrf.mxu0
    %v1308 = vadd.f32 %v972, %v1307
    %v1309 = vpop.f32.mrf.mxu0
    %1310 = vmatprep.mubr.f32.mxu0 0.0
    %1311 = vmatmul.mubr.f32.gmra.mxu0 %v1023
    %v1312 = vpop.f32.mrf.mxu0
    %v1313 = vadd.f32 %v972, %v1312
    %v1314 = vpop.f32.mrf.mxu0
    %1315 = vmatprep.mubr.f32.mxu0 0.0
    %1316 = vmatmul.mubr.f32.gmra.mxu0 %v1026
    %v1317 = vpop.f32.mrf.mxu0
    %v1318 = vadd.f32 %v972, %v1317
    %v1319 = vpop.f32.mrf.mxu0
    %1320 = vmatprep.mubr.f32.mxu0 0.0
    %1321 = vmatmul.mubr.f32.gmra.mxu0 %v1029
    %v1322 = vpop.f32.mrf.mxu0
    %v1323 = vadd.f32 %v972, %v1322
    %v1324 = vpop.f32.mrf.mxu0
    %1325 = vmatprep.mubr.f32.mxu0 0.0
    %1326 = vmatmul.mubr.f32.gmra.mxu0 %v1032
    %v1327 = vpop.f32.mrf.mxu0
    %v1328 = vadd.f32 %v972, %v1327
    %v1329 = vpop.f32.mrf.mxu0
    %1330 = vmatprep.mubr.f32.mxu0 0.0
    %1331 = vmatmul.mubr.f32.gmra.mxu0 %v1035
    %v1332 = vpop.f32.mrf.mxu0
    %v1333 = vadd.f32 %v972, %v1332
    %v1334 = vpop.f32.mrf.mxu0
    %1335 = vmatprep.mubr.f32.mxu0 0.0
    %1336 = vmatmul.mubr.f32.gmra.mxu0 %v1038
    %v1337 = vpop.f32.mrf.mxu0
    %v1338 = vadd.f32 %v972, %v1337
    %v1339 = vpop.f32.mrf.mxu0
    %1340 = vmatprep.mubr.f32.mxu0 0.0
    %1341 = vmatmul.mubr.f32.gmra.mxu0 %v1041
    %v1342 = vpop.f32.mrf.mxu0
    %v1343 = vadd.f32 %v972, %v1342
    %v1344 = vpop.f32.mrf.mxu0
    %1345 = vmatprep.mubr.f32.mxu0 0.0
    %1346 = vmatmul.mubr.f32.gmra.mxu0 %v1044
    %v1347 = vpop.f32.mrf.mxu0
    %v1348 = vadd.f32 %v972, %v1347
    %v1349 = vpop.f32.mrf.mxu0
    %1350 = vmatprep.mubr.f32.mxu0 0.0
    %1351 = vmatmul.mubr.f32.gmra.mxu0 %v1047
    %v1352 = vpop.f32.mrf.mxu0
    %v1353 = vadd.f32 %v972, %v1352
    %v1354 = vpop.f32.mrf.mxu0
    %1355 = vmatprep.mubr.f32.mxu0 0.0
    %1356 = vmatmul.mubr.f32.gmra.mxu0 %v1050
    %v1357 = vpop.f32.mrf.mxu0
    %v1358 = vadd.f32 %v972, %v1357
    %v1359 = vpop.f32.mrf.mxu0
    %1360 = vmatprep.mubr.f32.mxu0 0.0
    %1361 = vmatmul.mubr.f32.gmra.mxu0 %v1053
    %v1362 = vpop.f32.mrf.mxu0
    %v1363 = vadd.f32 %v972, %v1362
    %v1364 = vpop.f32.mrf.mxu0
    %1365 = vmatprep.mubr.f32.mxu0 0.0
    %1366 = vmatmul.mubr.f32.gmra.mxu0 %v1056
    %v1367 = vpop.f32.mrf.mxu0
    %v1368 = vadd.f32 %v972, %v1367
    %v1369 = vpop.f32.mrf.mxu0
    %1370 = vmatprep.mubr.f32.mxu0 0.0
    %1371 = vmatmul.mubr.f32.gmra.mxu0 %v1059
    %v1372 = vpop.f32.mrf.mxu0
    %v1373 = vadd.f32 %v972, %v1372
    %v1374 = vpop.f32.mrf.mxu0
    %1375 = vmatprep.mubr.f32.mxu0 0.0
    %1376 = vmatmul.mubr.f32.gmra.mxu0 %v1062
    %v1377 = vpop.f32.mrf.mxu0
    %v1378 = vadd.f32 %v972, %v1377
    %v1379 = vpop.f32.mrf.mxu0
    %1380 = vmatprep.mubr.f32.mxu0 0.0
    %1381 = vmatmul.mubr.f32.gmra.mxu0 %v1065
    %v1382 = vpop.f32.mrf.mxu0
    %v1383 = vadd.f32 %v972, %v1382
    %v1384 = vpop.f32.mrf.mxu0
    %1385 = vmatprep.mubr.f32.mxu0 0.0
    %1386 = vmatmul.mubr.f32.gmra.mxu0 %v1068
    %v1387 = vpop.f32.mrf.mxu0
    %v1388 = vadd.f32 %v972, %v1387
    %v1389 = vpop.f32.mrf.mxu0
    %1390 = vmatprep.mubr.f32.mxu0 0.0
    %1391 = vmatmul.mubr.f32.gmra.mxu0 %v1071
    %v1392 = vpop.f32.mrf.mxu0
    %v1393 = vadd.f32 %v972, %v1392
    %v1394 = vpop.f32.mrf.mxu0
    %1395 = vmatprep.mubr.f32.mxu0 0.0
    %1396 = vmatmul.mubr.f32.gmra.mxu0 %v1074
    %v1397 = vpop.f32.mrf.mxu0
    %v1398 = vadd.f32 %v972, %v1397
    %v1399 = vpop.f32.mrf.mxu0
    %1400 = vmatprep.mubr.f32.mxu0 0.0
    %1401 = vmatmul.mubr.f32.gmra.mxu0 %v1077
    %v1402 = vpop.f32.mrf.mxu0
    %v1403 = vadd.f32 %v972, %v1402
    %v1404 = vpop.f32.mrf.mxu0
    %1405 = vmatprep.mubr.f32.mxu0 0.0
    %1406 = vmatmul.mubr.f32.gmra.mxu0 %v1080
    %v1407 = vpop.f32.mrf.mxu0
    %v1408 = vadd.f32 %v972, %v1407
    %v1409 = vpop.f32.mrf.mxu0
    %1410 = vmatprep.mubr.f32.mxu0 0.0
    %1411 = vmatmul.mubr.f32.gmra.mxu0 %v1083
    %v1412 = vpop.f32.mrf.mxu0
    %v1413 = vadd.f32 %v972, %v1412
    %v1414 = vpop.f32.mrf.mxu0
    %1415 = vmatprep.mubr.f32.mxu0 0.0
    %1416 = vmatmul.mubr.f32.gmra.mxu0 %v1086
    %v1417 = vpop.f32.mrf.mxu0
    %v1418 = vadd.f32 %v972, %v1417
    %v1419 = vpop.f32.mrf.mxu0
    %1420 = vmatprep.mubr.f32.mxu0 0.0
    %1421 = vmatmul.mubr.f32.gmra.mxu0 %v1089
    %v1422 = vpop.f32.mrf.mxu0
    %v1423 = vadd.f32 %v972, %v1422
    %v1424 = vpop.f32.mrf.mxu0
    %1425 = vmatprep.mubr.f32.mxu0 0.0
    %1426 = vmatmul.mubr.f32.gmra.mxu0 %v1092
    %v1427 = vpop.f32.mrf.mxu0
    %v1428 = vadd.f32 %v972, %v1427
    %v1429 = vpop.f32.mrf.mxu0
    %1430 = vmatprep.mubr.f32.mxu0 0.0
    %1431 = vmatmul.mubr.f32.gmra.mxu0 %v1095
    %v1432 = vpop.f32.mrf.mxu0
    %v1433 = vadd.f32 %v972, %v1432
    %v1434 = vpop.f32.mrf.mxu0
    %1435 = vmatprep.mubr.f32.mxu0 0.0
    %1436 = vmatmul.mubr.f32.gmra.mxu0 %v1098
    %v1437 = vpop.f32.mrf.mxu0
    %v1438 = vadd.f32 %v972, %v1437
    %v1439 = vpop.f32.mrf.mxu0
    %1440 = vmatprep.mubr.f32.mxu0 0.0
    %1441 = vmatmul.mubr.f32.gmra.mxu0 %v1101
    %v1442 = vpop.f32.mrf.mxu0
    %v1443 = vadd.f32 %v972, %v1442
    %v1444 = vpop.f32.mrf.mxu0
    %1445 = vmatprep.mubr.f32.mxu0 0.0
    %1446 = vmatmul.mubr.f32.gmra.mxu0 %v1104
    %v1447 = vpop.f32.mrf.mxu0
    %v1448 = vadd.f32 %v972, %v1447
    %v1449 = vpop.f32.mrf.mxu0
    %1450 = vmatprep.mubr.f32.mxu0 0.0
    %1451 = vmatmul.mubr.f32.gmra.mxu0 %v1107
    %v1452 = vpop.f32.mrf.mxu0
    %v1453 = vadd.f32 %v972, %v1452
    %v1454 = vpop.f32.mrf.mxu0
    %1455 = vmatprep.mubr.f32.mxu0 0.0
    %1456 = vmatmul.mubr.f32.gmra.mxu0 %v1110
    %v1457 = vpop.f32.mrf.mxu0
    %v1458 = vadd.f32 %v972, %v1457
    %v1459 = vpop.f32.mrf.mxu0
    %1460 = vmatprep.mubr.f32.mxu0 0.0
    %1461 = vmatmul.mubr.f32.gmra.mxu0 %v1113
    %v1462 = vpop.f32.mrf.mxu0
    %v1463 = vadd.f32 %v972, %v1462
    %v1464 = vpop.f32.mrf.mxu0
    %1465 = vmatprep.mubr.f32.mxu0 0.0
    %1466 = vmatmul.mubr.f32.gmra.mxu0 %v1116
    %v1467 = vpop.f32.mrf.mxu0
    %v1468 = vadd.f32 %v972, %v1467
    %v1469 = vpop.f32.mrf.mxu0
    %1470 = vmatprep.mubr.f32.mxu0 0.0
    %1471 = vmatmul.mubr.f32.gmra.mxu0 %v1119
    %v1472 = vpop.f32.mrf.mxu0
    %v1473 = vadd.f32 %v972, %v1472
    %v1474 = vpop.f32.mrf.mxu0
    %1475 = vmatprep.mubr.f32.mxu0 0.0
    %1476 = vmatmul.mubr.f32.gmra.mxu0 %v1122
    %v1477 = vpop.f32.mrf.mxu0
    %v1478 = vadd.f32 %v972, %v1477
    %v1479 = vpop.f32.mrf.mxu0
    %1480 = vmatprep.mubr.f32.mxu0 0.0
    %1481 = vmatmul.mubr.f32.gmra.mxu0 %v1125
    %v1482 = vpop.f32.mrf.mxu0
    %v1483 = vadd.f32 %v972, %v1482
    %v1484 = vpop.f32.mrf.mxu0
    %1485 = vmatprep.mubr.f32.mxu0 0.0
    %1486 = vmatmul.mubr.f32.gmra.mxu0 %v1128
    %v1487 = vpop.f32.mrf.mxu0
    %v1488 = vadd.f32 %v972, %v1487
    %v1489 = vpop.f32.mrf.mxu0
    %1490 = vmatprep.mubr.f32.mxu0 0.0
    %1491 = vmatmul.mubr.f32.gmra.mxu0 %v1131
    %v1492 = vpop.f32.mrf.mxu0
    %v1493 = vadd.f32 %v972, %v1492
    %v1494 = vpop.f32.mrf.mxu0
    %1495 = vmatprep.mubr.f32.mxu0 0.0
    %1496 = vmatmul.mubr.f32.gmra.mxu0 %v1134
    %v1497 = vpop.f32.mrf.mxu0
    %v1498 = vadd.f32 %v972, %v1497
    %v1499 = vpop.f32.mrf.mxu0
    %1500 = vmatprep.mubr.f32.mxu0 0.0
    %1501 = vmatmul.mubr.f32.gmra.mxu0 %v1137
    %v1502 = vpop.f32.mrf.mxu0
    %v1503 = vadd.f32 %v972, %v1502
    %v1504 = vpop.f32.mrf.mxu0
    %1505 = vmatprep.mubr.f32.mxu0 0.0
    %1506 = vmatmul.mubr.f32.gmra.mxu0 %v1140
    %v1507 = vpop.f32.mrf.mxu0
    %v1508 = vadd.f32 %v972, %v1507
    %v1509 = vpop.f32.mrf.mxu0
    %1510 = vmatprep.mubr.f32.mxu0 0.0
    %1511 = vmatmul.mubr.f32.gmra.mxu0 %v1143
    %v1512 = vpop.f32.mrf.mxu0
    %v1513 = vadd.f32 %v972, %v1512
    %v1514 = vpop.f32.mrf.mxu0
    %1515 = vmatprep.mubr.f32.mxu0 0.0
    %1516 = vmatmul.mubr.f32.gmra.mxu0 %v1146
    %v1517 = vpop.f32.mrf.mxu0
    %v1518 = vadd.f32 %v972, %v1517
    %v1519 = vpop.f32.mrf.mxu0
    %1520 = vmatprep.mubr.f32.mxu0 0.0
    %1521 = vmatmul.mubr.f32.gmra.mxu0 %v1149
    %v1522 = vpop.f32.mrf.mxu0
    %v1523 = vadd.f32 %v972, %v1522
    %v1524 = vpop.f32.mrf.mxu0
    %1525 = vmatprep.mubr.f32.mxu0 0.0
    %1526 = vmatmul.mubr.f32.gmra.mxu0 %v1152
    %v1527 = vpop.f32.mrf.mxu0
    %v1528 = vadd.f32 %v972, %v1527
    %v1529 = vpop.f32.mrf.mxu0
    %1530 = vmatprep.mubr.f32.mxu0 0.0
    %1531 = vmatmul.mubr.f32.gmra.mxu0 %v1155
    %v1532 = vpop.f32.mrf.mxu0
    %v1533 = vadd.f32 %v972, %v1532
    %v1534 = vpop.f32.mrf.mxu0
    %1535 = vmatprep.mubr.f32.mxu0 0.0
    %1536 = vmatmul.mubr.f32.gmra.mxu0 %v1158
    %v1537 = vpop.f32.mrf.mxu0
    %v1538 = vadd.f32 %v972, %v1537
    %v1539 = vpop.f32.mrf.mxu0
    %1540 = vmatprep.mubr.f32.mxu0 0.0
    %1541 = vmatmul.mubr.f32.gmra.mxu0 %v1161
    %v1542 = vpop.f32.mrf.mxu0
    %v1543 = vadd.f32 %v972, %v1542
    %v1544 = vpop.f32.mrf.mxu0
    %1545 = vmatprep.mubr.f32.mxu0 0.0
    %1546 = vmatmul.mubr.f32.gmra.mxu0 %v1164
    %v1547 = vpop.f32.mrf.mxu0
    %v1548 = vadd.f32 %v972, %v1547
    %v1549 = vpop.f32.mrf.mxu0
    %1550 = vdwg.mxu0
    %v1551 = vmax.f32 %v1233, 0.0
    %v1552 = vmax.f32 %v1238, 0.0
    %v1553 = vmax.f32 %v1243, 0.0
    %v1554 = vmax.f32 %v1248, 0.0
    %v1555 = vmax.f32 %v1253, 0.0
    %v1556 = vmax.f32 %v1258, 0.0
    %v1557 = vmax.f32 %v1263, 0.0
    %v1558 = vmax.f32 %v1268, 0.0
    %v1559 = vmax.f32 %v1273, 0.0
    %v1560 = vmax.f32 %v1278, 0.0
    %v1561 = vmax.f32 %v1283, 0.0
    %v1562 = vmax.f32 %v1288, 0.0
    %v1563 = vmax.f32 %v1293, 0.0
    %v1564 = vmax.f32 %v1298, 0.0
    %v1565 = vmax.f32 %v1303, 0.0
    %v1566 = vmax.f32 %v1308, 0.0
    %v1567 = vmax.f32 %v1313, 0.0
    %v1568 = vmax.f32 %v1318, 0.0
    %v1569 = vmax.f32 %v1323, 0.0
    %v1570 = vmax.f32 %v1328, 0.0
    %v1571 = vmax.f32 %v1333, 0.0
    %v1572 = vmax.f32 %v1338, 0.0
    %v1573 = vmax.f32 %v1343, 0.0
    %v1574 = vmax.f32 %v1348, 0.0
    %v1575 = vmax.f32 %v1353, 0.0
    %v1576 = vmax.f32 %v1358, 0.0
    %v1577 = vmax.f32 %v1363, 0.0
    %v1578 = vmax.f32 %v1368, 0.0
    %v1579 = vmax.f32 %v1373, 0.0
    %v1580 = vmax.f32 %v1378, 0.0
    %v1581 = vmax.f32 %v1383, 0.0
    %v1582 = vmax.f32 %v1388, 0.0
    %v1583 = vmax.f32 %v1393, 0.0
    %v1584 = vmax.f32 %v1398, 0.0
    %v1585 = vmax.f32 %v1403, 0.0
    %v1586 = vmax.f32 %v1408, 0.0
    %v1587 = vmax.f32 %v1413, 0.0
    %v1588 = vmax.f32 %v1418, 0.0
    %v1589 = vmax.f32 %v1423, 0.0
    %v1590 = vmax.f32 %v1428, 0.0
    %v1591 = vmax.f32 %v1433, 0.0
    %v1592 = vmax.f32 %v1438, 0.0
    %v1593 = vmax.f32 %v1443, 0.0
    %v1594 = vmax.f32 %v1448, 0.0
    %v1595 = vmax.f32 %v1453, 0.0
    %v1596 = vmax.f32 %v1458, 0.0
    %v1597 = vmax.f32 %v1463, 0.0
    %v1598 = vmax.f32 %v1468, 0.0
    %v1599 = vmax.f32 %v1473, 0.0
    %v1600 = vmax.f32 %v1478, 0.0
    %v1601 = vmax.f32 %v1483, 0.0
    %v1602 = vmax.f32 %v1488, 0.0
    %v1603 = vmax.f32 %v1493, 0.0
    %v1604 = vmax.f32 %v1498, 0.0
    %v1605 = vmax.f32 %v1503, 0.0
    %v1606 = vmax.f32 %v1508, 0.0
    %v1607 = vmax.f32 %v1513, 0.0
    %v1608 = vmax.f32 %v1518, 0.0
    %v1609 = vmax.f32 %v1523, 0.0
    %v1610 = vmax.f32 %v1528, 0.0
    %v1611 = vmax.f32 %v1533, 0.0
    %v1612 = vmax.f32 %v1538, 0.0
    %v1613 = vmax.f32 %v1543, 0.0
    %v1614 = vmax.f32 %v1548, 0.0
    %v1615 = vld [vmem:[%s10] sm:$0x1]
    %v1617 = vlaneseq
    %v1618 = vshrl.u32 %v1617, 7
    %v1619 = vsub.s32 0, %v1618
    %v1620 = vrot.slane %v1615, %v1619
    %v1622 = vmul.f32 %v1551, %v1620
    %v1623 = vmul.f32 %v1552, %v1620
    %v1624 = vmul.f32 %v1553, %v1620
    %v1625 = vmul.f32 %v1554, %v1620
    %v1626 = vmul.f32 %v1555, %v1620
    %v1627 = vmul.f32 %v1556, %v1620
    %v1628 = vmul.f32 %v1557, %v1620
    %v1629 = vmul.f32 %v1558, %v1620
    %v1630 = vmul.f32 %v1559, %v1620
    %v1631 = vmul.f32 %v1560, %v1620
    %v1632 = vmul.f32 %v1561, %v1620
    %v1633 = vmul.f32 %v1562, %v1620
    %v1634 = vmul.f32 %v1563, %v1620
    %v1635 = vmul.f32 %v1564, %v1620
    %v1636 = vmul.f32 %v1565, %v1620
    %v1637 = vmul.f32 %v1566, %v1620
    %v1638 = vmul.f32 %v1567, %v1620
    %v1639 = vmul.f32 %v1568, %v1620
    %v1640 = vmul.f32 %v1569, %v1620
    %v1641 = vmul.f32 %v1570, %v1620
    %v1642 = vmul.f32 %v1571, %v1620
    %v1643 = vmul.f32 %v1572, %v1620
    %v1644 = vmul.f32 %v1573, %v1620
    %v1645 = vmul.f32 %v1574, %v1620
    %v1646 = vmul.f32 %v1575, %v1620
    %v1647 = vmul.f32 %v1576, %v1620
    %v1648 = vmul.f32 %v1577, %v1620
    %v1649 = vmul.f32 %v1578, %v1620
    %v1650 = vmul.f32 %v1579, %v1620
    %v1651 = vmul.f32 %v1580, %v1620
    %v1652 = vmul.f32 %v1581, %v1620
    %v1653 = vmul.f32 %v1582, %v1620
    %v1654 = vmul.f32 %v1583, %v1620
    %v1655 = vmul.f32 %v1584, %v1620
    %v1656 = vmul.f32 %v1585, %v1620
    %v1657 = vmul.f32 %v1586, %v1620
    %v1658 = vmul.f32 %v1587, %v1620
    %v1659 = vmul.f32 %v1588, %v1620
    %v1660 = vmul.f32 %v1589, %v1620
    %v1661 = vmul.f32 %v1590, %v1620
    %v1662 = vmul.f32 %v1591, %v1620
    %v1663 = vmul.f32 %v1592, %v1620
    %v1664 = vmul.f32 %v1593, %v1620
    %v1665 = vmul.f32 %v1594, %v1620
    %v1666 = vmul.f32 %v1595, %v1620
    %v1667 = vmul.f32 %v1596, %v1620
    %v1668 = vmul.f32 %v1597, %v1620
    %v1669 = vmul.f32 %v1598, %v1620
    %v1670 = vmul.f32 %v1599, %v1620
    %v1671 = vmul.f32 %v1600, %v1620
    %v1672 = vmul.f32 %v1601, %v1620
    %v1673 = vmul.f32 %v1602, %v1620
    %v1674 = vmul.f32 %v1603, %v1620
    %v1675 = vmul.f32 %v1604, %v1620
    %v1676 = vmul.f32 %v1605, %v1620
    %v1677 = vmul.f32 %v1606, %v1620
    %v1678 = vmul.f32 %v1607, %v1620
    %v1679 = vmul.f32 %v1608, %v1620
    %v1680 = vmul.f32 %v1609, %v1620
    %v1681 = vmul.f32 %v1610, %v1620
    %v1682 = vmul.f32 %v1611, %v1620
    %v1683 = vmul.f32 %v1612, %v1620
    %v1684 = vmul.f32 %v1613, %v1620
    %v1685 = vmul.f32 %v1614, %v1620
    %v1686 = vld [vmem:[%s11] sm:$0x1]
    %v1688 = vlaneseq
    %v1689 = vshrl.u32 %v1688, 7
    %v1690 = vsub.s32 0, %v1689
    %v1691 = vrot.slane %v1686, %v1690
    %v1693 = vadd.f32 %v1622, %v1691
    %v1694 = vadd.f32 %v1623, %v1691
    %v1695 = vadd.f32 %v1624, %v1691
    %v1696 = vadd.f32 %v1625, %v1691
    %v1697 = vadd.f32 %v1626, %v1691
    %v1698 = vadd.f32 %v1627, %v1691
    %v1699 = vadd.f32 %v1628, %v1691
    %v1700 = vadd.f32 %v1629, %v1691
    %v1701 = vadd.f32 %v1630, %v1691
    %v1702 = vadd.f32 %v1631, %v1691
    %v1703 = vadd.f32 %v1632, %v1691
    %v1704 = vadd.f32 %v1633, %v1691
    %v1705 = vadd.f32 %v1634, %v1691
    %v1706 = vadd.f32 %v1635, %v1691
    %v1707 = vadd.f32 %v1636, %v1691
    %v1708 = vadd.f32 %v1637, %v1691
    %v1709 = vadd.f32 %v1638, %v1691
    %v1710 = vadd.f32 %v1639, %v1691
    %v1711 = vadd.f32 %v1640, %v1691
    %v1712 = vadd.f32 %v1641, %v1691
    %v1713 = vadd.f32 %v1642, %v1691
    %v1714 = vadd.f32 %v1643, %v1691
    %v1715 = vadd.f32 %v1644, %v1691
    %v1716 = vadd.f32 %v1645, %v1691
    %v1717 = vadd.f32 %v1646, %v1691
    %v1718 = vadd.f32 %v1647, %v1691
    %v1719 = vadd.f32 %v1648, %v1691
    %v1720 = vadd.f32 %v1649, %v1691
    %v1721 = vadd.f32 %v1650, %v1691
    %v1722 = vadd.f32 %v1651, %v1691
    %v1723 = vadd.f32 %v1652, %v1691
    %v1724 = vadd.f32 %v1653, %v1691
    %v1725 = vadd.f32 %v1654, %v1691
    %v1726 = vadd.f32 %v1655, %v1691
    %v1727 = vadd.f32 %v1656, %v1691
    %v1728 = vadd.f32 %v1657, %v1691
    %v1729 = vadd.f32 %v1658, %v1691
    %v1730 = vadd.f32 %v1659, %v1691
    %v1731 = vadd.f32 %v1660, %v1691
    %v1732 = vadd.f32 %v1661, %v1691
    %v1733 = vadd.f32 %v1662, %v1691
    %v1734 = vadd.f32 %v1663, %v1691
    %v1735 = vadd.f32 %v1664, %v1691
    %v1736 = vadd.f32 %v1665, %v1691
    %v1737 = vadd.f32 %v1666, %v1691
    %v1738 = vadd.f32 %v1667, %v1691
    %v1739 = vadd.f32 %v1668, %v1691
    %v1740 = vadd.f32 %v1669, %v1691
    %v1741 = vadd.f32 %v1670, %v1691
    %v1742 = vadd.f32 %v1671, %v1691
    %v1743 = vadd.f32 %v1672, %v1691
    %v1744 = vadd.f32 %v1673, %v1691
    %v1745 = vadd.f32 %v1674, %v1691
    %v1746 = vadd.f32 %v1675, %v1691
    %v1747 = vadd.f32 %v1676, %v1691
    %v1748 = vadd.f32 %v1677, %v1691
    %v1749 = vadd.f32 %v1678, %v1691
    %v1750 = vadd.f32 %v1679, %v1691
    %v1751 = vadd.f32 %v1680, %v1691
    %v1752 = vadd.f32 %v1681, %v1691
    %v1753 = vadd.f32 %v1682, %v1691
    %v1754 = vadd.f32 %v1683, %v1691
    %v1755 = vadd.f32 %v1684, %v1691
    %v1756 = vadd.f32 %v1685, %v1691
    %v1757 = vpack.c.bf16 %v1694, %v1693
    %v1758 = vpack.c.bf16 %v1696, %v1695
    %v1759 = vpack.c.bf16 %v1698, %v1697
    %v1760 = vpack.c.bf16 %v1700, %v1699
    %v1761 = vpack.c.bf16 %v1702, %v1701
    %v1762 = vpack.c.bf16 %v1704, %v1703
    %v1763 = vpack.c.bf16 %v1706, %v1705
    %v1764 = vpack.c.bf16 %v1708, %v1707
    %v1765 = vpack.c.bf16 %v1710, %v1709
    %v1766 = vpack.c.bf16 %v1712, %v1711
    %v1767 = vpack.c.bf16 %v1714, %v1713
    %v1768 = vpack.c.bf16 %v1716, %v1715
    %v1769 = vpack.c.bf16 %v1718, %v1717
    %v1770 = vpack.c.bf16 %v1720, %v1719
    %v1771 = vpack.c.bf16 %v1722, %v1721
    %v1772 = vpack.c.bf16 %v1724, %v1723
    %v1773 = vpack.c.bf16 %v1726, %v1725
    %v1774 = vpack.c.bf16 %v1728, %v1727
    %v1775 = vpack.c.bf16 %v1730, %v1729
    %v1776 = vpack.c.bf16 %v1732, %v1731
    %v1777 = vpack.c.bf16 %v1734, %v1733
    %v1778 = vpack.c.bf16 %v1736, %v1735
    %v1779 = vpack.c.bf16 %v1738, %v1737
    %v1780 = vpack.c.bf16 %v1740, %v1739
    %v1781 = vpack.c.bf16 %v1742, %v1741
    %v1782 = vpack.c.bf16 %v1744, %v1743
    %v1783 = vpack.c.bf16 %v1746, %v1745
    %v1784 = vpack.c.bf16 %v1748, %v1747
    %v1785 = vpack.c.bf16 %v1750, %v1749
    %v1786 = vpack.c.bf16 %v1752, %v1751
    %v1787 = vpack.c.bf16 %v1754, %v1753
    %v1788 = vpack.c.bf16 %v1756, %v1755
    %v1821 = vunpack.c.l.b16 %v1757
    %v1822 = vunpack.c.h.b16 %v1757
    %v1823 = vunpack.c.l.b16 %v1758
    %v1824 = vunpack.c.h.b16 %v1758
    %v1825 = vunpack.c.l.b16 %v1759
    %v1826 = vunpack.c.h.b16 %v1759
    %v1827 = vunpack.c.l.b16 %v1760
    %v1828 = vunpack.c.h.b16 %v1760
    %v1829 = vunpack.c.l.b16 %v1761
    %v1830 = vunpack.c.h.b16 %v1761
    %v1831 = vunpack.c.l.b16 %v1762
    %v1832 = vunpack.c.h.b16 %v1762
    %v1833 = vunpack.c.l.b16 %v1763
    %v1834 = vunpack.c.h.b16 %v1763
    %v1835 = vunpack.c.l.b16 %v1764
    %v1836 = vunpack.c.h.b16 %v1764
    %v1837 = vunpack.c.l.b16 %v1765
    %v1838 = vunpack.c.h.b16 %v1765
    %v1839 = vunpack.c.l.b16 %v1766
    %v1840 = vunpack.c.h.b16 %v1766
    %v1841 = vunpack.c.l.b16 %v1767
    %v1842 = vunpack.c.h.b16 %v1767
    %v1843 = vunpack.c.l.b16 %v1768
    %v1844 = vunpack.c.h.b16 %v1768
    %v1845 = vunpack.c.l.b16 %v1769
    %v1846 = vunpack.c.h.b16 %v1769
    %v1847 = vunpack.c.l.b16 %v1770
    %v1848 = vunpack.c.h.b16 %v1770
    %v1849 = vunpack.c.l.b16 %v1771
    %v1850 = vunpack.c.h.b16 %v1771
    %v1851 = vunpack.c.l.b16 %v1772
    %v1852 = vunpack.c.h.b16 %v1772
    %v1853 = vunpack.c.l.b16 %v1773
    %v1854 = vunpack.c.h.b16 %v1773
    %v1855 = vunpack.c.l.b16 %v1774
    %v1856 = vunpack.c.h.b16 %v1774
    %v1857 = vunpack.c.l.b16 %v1775
    %v1858 = vunpack.c.h.b16 %v1775
    %v1859 = vunpack.c.l.b16 %v1776
    %v1860 = vunpack.c.h.b16 %v1776
    %v1861 = vunpack.c.l.b16 %v1777
    %v1862 = vunpack.c.h.b16 %v1777
    %v1863 = vunpack.c.l.b16 %v1778
    %v1864 = vunpack.c.h.b16 %v1778
    %v1865 = vunpack.c.l.b16 %v1779
    %v1866 = vunpack.c.h.b16 %v1779
    %v1867 = vunpack.c.l.b16 %v1780
    %v1868 = vunpack.c.h.b16 %v1780
    %v1869 = vunpack.c.l.b16 %v1781
    %v1870 = vunpack.c.h.b16 %v1781
    %v1871 = vunpack.c.l.b16 %v1782
    %v1872 = vunpack.c.h.b16 %v1782
    %v1873 = vunpack.c.l.b16 %v1783
    %v1874 = vunpack.c.h.b16 %v1783
    %v1875 = vunpack.c.l.b16 %v1784
    %v1876 = vunpack.c.h.b16 %v1784
    %v1877 = vunpack.c.l.b16 %v1785
    %v1878 = vunpack.c.h.b16 %v1785
    %v1879 = vunpack.c.l.b16 %v1786
    %v1880 = vunpack.c.h.b16 %v1786
    %v1881 = vunpack.c.l.b16 %v1787
    %v1882 = vunpack.c.h.b16 %v1787
    %v1883 = vunpack.c.l.b16 %v1788
    %v1884 = vunpack.c.h.b16 %v1788
    %v1885 = vpack.c.b16 %v1821, %v1821
    %v1886 = vpack.c.b16 %v1822, %v1822
    %v1887 = vpack.c.b16 %v1823, %v1823
    %v1888 = vpack.c.b16 %v1824, %v1824
    %v1889 = vpack.c.b16 %v1825, %v1825
    %v1890 = vpack.c.b16 %v1826, %v1826
    %v1891 = vpack.c.b16 %v1827, %v1827
    %v1892 = vpack.c.b16 %v1828, %v1828
    %v1893 = vpack.c.b16 %v1829, %v1829
    %v1894 = vpack.c.b16 %v1830, %v1830
    %v1895 = vpack.c.b16 %v1831, %v1831
    %v1896 = vpack.c.b16 %v1832, %v1832
    %v1897 = vpack.c.b16 %v1833, %v1833
    %v1898 = vpack.c.b16 %v1834, %v1834
    %v1899 = vpack.c.b16 %v1835, %v1835
    %v1900 = vpack.c.b16 %v1836, %v1836
    %v1901 = vpack.c.b16 %v1837, %v1837
    %v1902 = vpack.c.b16 %v1838, %v1838
    %v1903 = vpack.c.b16 %v1839, %v1839
    %v1904 = vpack.c.b16 %v1840, %v1840
    %v1905 = vpack.c.b16 %v1841, %v1841
    %v1906 = vpack.c.b16 %v1842, %v1842
    %v1907 = vpack.c.b16 %v1843, %v1843
    %v1908 = vpack.c.b16 %v1844, %v1844
    %v1909 = vpack.c.b16 %v1845, %v1845
    %v1910 = vpack.c.b16 %v1846, %v1846
    %v1911 = vpack.c.b16 %v1847, %v1847
    %v1912 = vpack.c.b16 %v1848, %v1848
    %v1913 = vpack.c.b16 %v1849, %v1849
    %v1914 = vpack.c.b16 %v1850, %v1850
    %v1915 = vpack.c.b16 %v1851, %v1851
    %v1916 = vpack.c.b16 %v1852, %v1852
    %v1917 = vpack.c.b16 %v1853, %v1853
    %v1918 = vpack.c.b16 %v1854, %v1854
    %v1919 = vpack.c.b16 %v1855, %v1855
    %v1920 = vpack.c.b16 %v1856, %v1856
    %v1921 = vpack.c.b16 %v1857, %v1857
    %v1922 = vpack.c.b16 %v1858, %v1858
    %v1923 = vpack.c.b16 %v1859, %v1859
    %v1924 = vpack.c.b16 %v1860, %v1860
    %v1925 = vpack.c.b16 %v1861, %v1861
    %v1926 = vpack.c.b16 %v1862, %v1862
    %v1927 = vpack.c.b16 %v1863, %v1863
    %v1928 = vpack.c.b16 %v1864, %v1864
    %v1929 = vpack.c.b16 %v1865, %v1865
    %v1930 = vpack.c.b16 %v1866, %v1866
    %v1931 = vpack.c.b16 %v1867, %v1867
    %v1932 = vpack.c.b16 %v1868, %v1868
    %v1933 = vpack.c.b16 %v1869, %v1869
    %v1934 = vpack.c.b16 %v1870, %v1870
    %v1935 = vpack.c.b16 %v1871, %v1871
    %v1936 = vpack.c.b16 %v1872, %v1872
    %v1937 = vpack.c.b16 %v1873, %v1873
    %v1938 = vpack.c.b16 %v1874, %v1874
    %v1939 = vpack.c.b16 %v1875, %v1875
    %v1940 = vpack.c.b16 %v1876, %v1876
    %v1941 = vpack.c.b16 %v1877, %v1877
    %v1942 = vpack.c.b16 %v1878, %v1878
    %v1943 = vpack.c.b16 %v1879, %v1879
    %v1944 = vpack.c.b16 %v1880, %v1880
    %v1945 = vpack.c.b16 %v1881, %v1881
    %v1946 = vpack.c.b16 %v1882, %v1882
    %v1947 = vpack.c.b16 %v1883, %v1883
    %v1948 = vpack.c.b16 %v1884, %v1884
    %2013 = vst [vmem:[#allocation4] sm:$0xf] %v1885
    %2014 = vst [vmem:[#allocation4 + $0x4] sm:$0xf] %v1886
    %2015 = vst [vmem:[#allocation4 + $0x8] sm:$0xf] %v1887
    %2016 = vst [vmem:[#allocation4 + $0xc] sm:$0xf] %v1888
    %2017 = vst [vmem:[#allocation4 + $0x10] sm:$0xf] %v1889
    %2018 = vst [vmem:[#allocation4 + $0x14] sm:$0xf] %v1890
    %2019 = vst [vmem:[#allocation4 + $0x18] sm:$0xf] %v1891
    %2020 = vst [vmem:[#allocation4 + $0x1c] sm:$0xf] %v1892
    %2021 = vst [vmem:[#allocation4 + $0x20] sm:$0xf] %v1893
    %2022 = vst [vmem:[#allocation4 + $0x24] sm:$0xf] %v1894
    %2023 = vst [vmem:[#allocation4 + $0x28] sm:$0xf] %v1895
    %2024 = vst [vmem:[#allocation4 + $0x2c] sm:$0xf] %v1896
    %2025 = vst [vmem:[#allocation4 + $0x30] sm:$0xf] %v1897
    %2026 = vst [vmem:[#allocation4 + $0x34] sm:$0xf] %v1898
    %2027 = vst [vmem:[#allocation4 + $0x38] sm:$0xf] %v1899
    %2028 = vst [vmem:[#allocation4 + $0x3c] sm:$0xf] %v1900
    %2029 = vst [vmem:[#allocation4 + $0x40] sm:$0xf] %v1901
    %2030 = vst [vmem:[#allocation4 + $0x44] sm:$0xf] %v1902
    %2031 = vst [vmem:[#allocation4 + $0x48] sm:$0xf] %v1903
    %2032 = vst [vmem:[#allocation4 + $0x4c] sm:$0xf] %v1904
    %2033 = vst [vmem:[#allocation4 + $0x50] sm:$0xf] %v1905
    %2034 = vst [vmem:[#allocation4 + $0x54] sm:$0xf] %v1906
    %2035 = vst [vmem:[#allocation4 + $0x58] sm:$0xf] %v1907
    %2036 = vst [vmem:[#allocation4 + $0x5c] sm:$0xf] %v1908
    %2037 = vst [vmem:[#allocation4 + $0x60] sm:$0xf] %v1909
    %2038 = vst [vmem:[#allocation4 + $0x64] sm:$0xf] %v1910
    %2039 = vst [vmem:[#allocation4 + $0x68] sm:$0xf] %v1911
    %2040 = vst [vmem:[#allocation4 + $0x6c] sm:$0xf] %v1912
    %2041 = vst [vmem:[#allocation4 + $0x70] sm:$0xf] %v1913
    %2042 = vst [vmem:[#allocation4 + $0x74] sm:$0xf] %v1914
    %2043 = vst [vmem:[#allocation4 + $0x78] sm:$0xf] %v1915
    %2044 = vst [vmem:[#allocation4 + $0x7c] sm:$0xf] %v1916
    %2045 = vst [vmem:[#allocation4 + $0x80] sm:$0xf] %v1917
    %2046 = vst [vmem:[#allocation4 + $0x84] sm:$0xf] %v1918
    %2047 = vst [vmem:[#allocation4 + $0x88] sm:$0xf] %v1919
    %2048 = vst [vmem:[#allocation4 + $0x8c] sm:$0xf] %v1920
    %2049 = vst [vmem:[#allocation4 + $0x90] sm:$0xf] %v1921
    %2050 = vst [vmem:[#allocation4 + $0x94] sm:$0xf] %v1922
    %2051 = vst [vmem:[#allocation4 + $0x98] sm:$0xf] %v1923
    %2052 = vst [vmem:[#allocation4 + $0x9c] sm:$0xf] %v1924
    %2053 = vst [vmem:[#allocation4 + $0xa0] sm:$0xf] %v1925
    %2054 = vst [vmem:[#allocation4 + $0xa4] sm:$0xf] %v1926
    %2055 = vst [vmem:[#allocation4 + $0xa8] sm:$0xf] %v1927
    %2056 = vst [vmem:[#allocation4 + $0xac] sm:$0xf] %v1928
    %2057 = vst [vmem:[#allocation4 + $0xb0] sm:$0xf] %v1929
    %2058 = vst [vmem:[#allocation4 + $0xb4] sm:$0xf] %v1930
    %2059 = vst [vmem:[#allocation4 + $0xb8] sm:$0xf] %v1931
    %2060 = vst [vmem:[#allocation4 + $0xbc] sm:$0xf] %v1932
    %2061 = vst [vmem:[#allocation4 + $0xc0] sm:$0xf] %v1933
    %2062 = vst [vmem:[#allocation4 + $0xc4] sm:$0xf] %v1934
    %2063 = vst [vmem:[#allocation4 + $0xc8] sm:$0xf] %v1935
    %2064 = vst [vmem:[#allocation4 + $0xcc] sm:$0xf] %v1936
    %2065 = vst [vmem:[#allocation4 + $0xd0] sm:$0xf] %v1937
    %2066 = vst [vmem:[#allocation4 + $0xd4] sm:$0xf] %v1938
    %2067 = vst [vmem:[#allocation4 + $0xd8] sm:$0xf] %v1939
    %2068 = vst [vmem:[#allocation4 + $0xdc] sm:$0xf] %v1940
    %2069 = vst [vmem:[#allocation4 + $0xe0] sm:$0xf] %v1941
    %2070 = vst [vmem:[#allocation4 + $0xe4] sm:$0xf] %v1942
    %2071 = vst [vmem:[#allocation4 + $0xe8] sm:$0xf] %v1943
    %2072 = vst [vmem:[#allocation4 + $0xec] sm:$0xf] %v1944
    %2073 = vst [vmem:[#allocation4 + $0xf0] sm:$0xf] %v1945
    %2074 = vst [vmem:[#allocation4 + $0xf4] sm:$0xf] %v1946
    %2075 = vst [vmem:[#allocation4 + $0xf8] sm:$0xf] %v1947
    %2076 = vst [vmem:[#allocation4 + $0xfc] sm:$0xf] %v1948
    // Predicated region
    $region50: #{tpu_custom_call.1} parent=1 // pred_check
      _
    $region51: #{tpu_custom_call.1} parent=1 // pred_check_branch
      %2078 = sbr.rel (0) target = $region53
    $region52: #{tpu_custom_call.1} parent=1 // pred_region
      %s2080 = ssub.s32 512, 512
      %2081 = vsyncadd [#allocation3], %s2080
      %s2083 = sshll.u32 [#allocation2], 4
      %s2084 = int_to_ptr.vmem [resolvable:$true] %s2083
      %2086 = dma.vmem_to_hbm [thread:$0]  %s2084, 512, %s12, [#allocation3]
    $region53: #{tpu_custom_call.1} parent=1 // pred_fallthru
      _
    // Predicated region
    $region54: #{tpu_custom_call.1} parent=1 // pred_check
      _
    $region55: #{tpu_custom_call.1} parent=1 // pred_check_branch
      %2088 = sbr.rel (0) target = $region57
    $region56: #{tpu_custom_call.1} parent=1 // pred_region
      %s2090 = ssub.s32 4096, 4096
      %2091 = vsyncadd [#allocation5], %s2090
      %s2092 = sshll.u32 [#allocation4], 4
      %s2093 = int_to_ptr.vmem [resolvable:$true] %s2092
      %2098 = dma.vmem_to_hbm [thread:$0]  %s2093, 4096, %s13, [#allocation5], 64, 64, 4
    $region57: #{tpu_custom_call.1} parent=1 // pred_fallthru
      _
    // Predicated region
    $region58: #{tpu_custom_call.1} parent=1 // pred_check
      _
    $region59: #{tpu_custom_call.1} parent=1 // pred_check_branch
      %2100 = sbr.rel (0) target = $region61
    $region60: #{tpu_custom_call.1} parent=1 // pred_region
      %2101 = dma.done [#allocation3], 512
    $region61: #{tpu_custom_call.1} parent=1 // pred_fallthru
      _
    // Predicated region
    $region62: #{tpu_custom_call.1} parent=1 // pred_check
      _
    $region63: #{tpu_custom_call.1} parent=1 // pred_check_branch
      %2103 = sbr.rel (0) target = $region65
    $region64: #{tpu_custom_call.1} parent=1 // pred_region
      %2104 = dma.done [#allocation5], 4096
    $region65: #{tpu_custom_call.1} parent=1 // pred_fallthru
      _
    %2105 = vsyncpa [#allocation3], 1
    %2106 = vsyncpa [#allocation5], 1

</llo_original>
